<compile_context>
chip_gen: v5e
topology: v5e:2x2
jax: 0.10.0
libtpu: 0.0.40
codegen_flags: <defaults>
</compile_context>

<pallas_src>
import jax
import jax.numpy as jnp
from jax.experimental import pallas as pl
from jax.experimental.pallas import tpu as pltpu


def _round_up(x, m):
    return ((x + m - 1) // m) * m


def _vmem_capacity_bytes():
    """Physical VMEM per TensorCore (generation aware); conservative fallback
    (v7x has 64 MiB per core) if the query is unavailable."""
    try:
        cap = int(getattr(pltpu.get_tpu_info(), "vmem_capacity_bytes", 0))
        if cap > 0:
            return cap
    except Exception:
        pass
    return 64 * 1024 * 1024


def _fixed_vmem_bytes(H, W, src_store, K, cout_pad):
    """VMEM that does not depend on the strip height."""
    b = sum(2 * H * W * p * 2 for p in src_store)   # double-buffered bf16 inputs
    b += 2 * K * cout_pad * 2                        # double-buffered weight slab
    b += 2 * 2 * cout_pad * 4                        # scale / bias
    return b


def _strip_vmem_bytes(th, W, P, cout_pad):
    """VMEM that scales with the strip height."""
    return ((th + 2) * (W + 16) * P * 2              # halo scratch
            + 2 * th * W * cout_pad * 2              # double-buffered output strip
            + 2 * th * W * cout_pad * 4              # f32 accumulator + epilogue
            + 3 * th * W * P * 2)                    # band / window temporaries


def _pick_tile_h(N, H, W, P, cout_pad, src_store, K, vmem_cap):
    """Strip height: a divisor of H whose full VMEM footprint fits a
    generation-aware budget, preferring MXU-friendly M = TH*W (multiple of
    256) and keeping >= 2 grid steps per TensorCore for pipelining."""
    budget = max(int(0.55 * vmem_cap)
                 - _fixed_vmem_bytes(H, W, src_store, K, cout_pad),
                 2 * 1024 * 1024)
    divs = [d for d in range(1, H + 1) if H % d == 0]
    fitting = [d for d in divs if _strip_vmem_bytes(d, W, P, cout_pad) <= budget]
    if not fitting:
        fitting = [1]
    good = [d for d in fitting if (d * W) % 256 == 0 and d * W >= 256]
    th = max(good) if good else max(fitting)
    while N * (H // th) < 4:                         # keep both cores pipelined
        smaller = [d for d in fitting if d < th]
        if not smaller:
            break
        th = max(smaller)
    return th


# ----------------------------------------------------------------------------
# Pallas kernel: fused (implicit tight concat) + 3x3 conv + BN affine + ReLU6
# ----------------------------------------------------------------------------
def _make_conv_kernel(nsrc, H, W, TH, src_ch, src_store, P, cout_pad):
    offs = []
    o = 0
    for c in src_ch:
        offs.append(o)
        o += c

    def kernel(*refs):
        # refs = (*src_refs, w_ref, s_ref, b_ref, o_ref, pad_ref)
        src_refs = refs[:nsrc]
        w_ref, s_ref, b_ref, o_ref, pad_ref = refs[nsrc:]

        s_idx = pl.program_id(1)
        last = pl.num_programs(1) - 1
        row0 = pl.multiple_of(s_idx * TH, TH)        # first output row of strip

        # Tight (real-channel) packed row loader.  Each source is loaded at its
        # full lane-aligned stored width, zero-extended to P lanes (aligned
        # concat), rotated to its packed lane offset with pltpu.roll (XLU) and
        # summed.  Stored channel padding is exact zeros, so the sum places each
        # link's real channels back-to-back and zeros everywhere else.
        def load_packed_rows(start, nrows):
            acc = None
            for j in range(nsrc):
                v = src_refs[j][0, pl.ds(start, nrows), :, :]
                if src_store[j] < P:
                    v = jnp.concatenate(
                        [v, jnp.zeros((nrows, W, P - src_store[j]), jnp.bfloat16)],
                        axis=-1)
                if offs[j] > 0:
                    v = pltpu.roll(v, offs[j], axis=2)
                acc = v if acc is None else acc + v
            return acc

        # --- strip-local haloed input in VMEM scratch ------------------------
        # scratch row t <-> image row row0 + t - 1 ; scratch col c+8 <-> image col c
        zcol = jnp.zeros((TH + 2, 8, P), jnp.bfloat16)
        pad_ref[:, 0:8, :] = zcol                    # left halo band (col 7 read)
        pad_ref[:, 8 + W:16 + W, :] = zcol           # right halo band (col 8+W read)

        pad_ref[1:TH + 1, 8:8 + W, :] = load_packed_rows(row0, TH)

        @pl.when(s_idx == 0)
        def _():
            pad_ref[0:1, 8:8 + W, :] = jnp.zeros((1, W, P), jnp.bfloat16)

        @pl.when(s_idx > 0)
        def _():
            pad_ref[0:1, 8:8 + W, :] = load_packed_rows(row0 - 1, 1)

        @pl.when(s_idx == last)
        def _():
            pad_ref[TH + 1:TH + 2, 8:8 + W, :] = jnp.zeros((1, W, P), jnp.bfloat16)

        @pl.when(s_idx < last)
        def _():
            pad_ref[TH + 1:TH + 2, 8:8 + W, :] = load_packed_rows(row0 + TH, 1)

        # --- 3x3 conv: 9 accumulating MXU matmuls (no im2col slab) -----------
        acc = jnp.zeros((TH * W, cout_pad), jnp.float32)
        for dy in range(3):
            band = pad_ref[dy:dy + TH, :, :]         # (TH, W+16, P)
            for dx in range(3):
                # TODO(synk): dx = 0 / 2 windows are sublane-misaligned; a
                # sublane roll of the aligned center window would move this
                # relayout onto the XLU.
                win = band[:, 7 + dx:7 + dx + W, :]  # (TH, W, P)
                kidx = dy * 3 + dx
                acc = acc + jnp.dot(win.reshape(TH * W, P),
                                    w_ref[kidx * P:(kidx + 1) * P, :],
                                    preferred_element_type=jnp.float32)

        y = acc * s_ref[...] + b_ref[...]            # BN affine (f32)
        y = jnp.clip(y, 0.0, 6.0)                    # ReLU6
        o_ref[0] = y.reshape(TH, W, cout_pad).astype(o_ref.dtype)

    return kernel


def conv3x3_bn_relu6(srcs, src_ch, w_slab, scale, bias):
    """Fused 3x3 'SAME' conv + BN + ReLU6 over a list of channel-padded NHWC
    bf16 sources (the tight channel concat of the HarDBlock links happens
    inside the kernel).  Returns (N, H, W, Cout_pad) bf16."""
    N, H, W, _ = srcs[0].shape
    assert W % 8 == 0, "W must be a multiple of 8 (TPU sublane)"
    src_store = [int(s.shape[-1]) for s in srcs]
    K, cout_pad = int(w_slab.shape[0]), int(w_slab.shape[1])
    P = K // 9
    assert K == 9 * P and P % 128 == 0 and cout_pad % 128 == 0
    assert sum(src_ch) <= P

    vmem_cap = _vmem_capacity_bytes()
    TH = _pick_tile_h(N, H, W, P, cout_pad, src_store, K, vmem_cap)
    S = H // TH
    kernel = _make_conv_kernel(len(srcs), H, W, TH, list(src_ch), src_store,
                               P, cout_pad)

    in_specs = (
        [pl.BlockSpec((1, H, W, p), lambda n, s: (n, 0, 0, 0)) for p in src_store]
        + [pl.BlockSpec((K, cout_pad), lambda n, s: (0, 0)),
           pl.BlockSpec((1, cout_pad), lambda n, s: (0, 0)),
           pl.BlockSpec((1, cout_pad), lambda n, s: (0, 0))])
    out_specs = pl.BlockSpec((1, TH, W, cout_pad), lambda n, s: (n, s, 0, 0))

    est = (_fixed_vmem_bytes(H, W, src_store, K, cout_pad)
           + _strip_vmem_bytes(TH, W, P, cout_pad))
    vmem_limit = int(max(min(int(1.5 * est), int(0.9 * vmem_cap)), 32 * 2 ** 20))

    return pl.pallas_call(
        kernel,
        out_shape=jax.ShapeDtypeStruct((N, H, W, cout_pad), jnp.bfloat16),
        grid_spec=pltpu.PrefetchScalarGridSpec(
            num_scalar_prefetch=0,
            grid=(N, S),
            in_specs=in_specs,
            out_specs=out_specs,
            scratch_shapes=[pltpu.VMEM((TH + 2, W + 16, P), jnp.bfloat16)]),
        compiler_params=pltpu.CompilerParams(
            dimension_semantics=("parallel", "parallel"),
            vmem_limit_bytes=vmem_limit),
    )(*srcs, w_slab, scale, bias)


# ----------------------------------------------------------------------------
# HarDBlock link computation (identical to the PyTorch reference)
# ----------------------------------------------------------------------------
def get_link(layer, base_ch, growth_rate, grmul):
    if layer == 0:
        return base_ch, 0, []
    out_channels = growth_rate
    link = []
    for i in range(10):
        dv = 2 ** i
        if layer % dv == 0:
            k = layer - dv
            link.append(k)
            if i > 0:
                out_channels *= grmul
    out_channels = int(int(out_channels + 1) / 2) * 2
    in_channels = 0
    for i in link:
        ch, _, _ = get_link(i, base_ch, growth_rate, grmul)
        in_channels += ch
    return out_channels, in_channels, link


class HarDBlockPallas:
    """HarDBlock(in_channels, growth_rate, grmul, n_layers), dwconv=False.

    BatchNorm runs in inference form: gamma/beta/running stats (deterministic
    init) folded into a per-channel scale and bias applied inside the kernel.
    """

    def __init__(self, in_channels, growth_rate, grmul, n_layers,
                 keepBase=False, key=None):
        self.keepBase = keepBase
        self.in_channels = in_channels
        self.links = []
        self.layer_out_ch = []
        self.ref_params = []      # (w_hwio f32, scale, bias)       -- unpadded
        self.kernel_params = []   # (src_ch, w_slab bf16, scale_pad, bias_pad)
        self.out_channels = 0
        key = jax.random.PRNGKey(0) if key is None else key
        eps = 1e-5

        def src_channels(idx):    # channels of layers_[idx] (idx 0 = input)
            return in_channels if idx == 0 else self.layer_out_ch[idx - 1]

        for i in range(n_layers):
            outch, inch, link = get_link(i + 1, in_channels, growth_rate, grmul)
            self.links.append(link)
            self.layer_out_ch.append(outch)

            key, kw, kg, kb, km, kv = jax.random.split(key, 6)
            w = 0.1 * jax.random.normal(kw, (3, 3, inch, outch), jnp.float32)
            gamma = 0.5 + jax.random.uniform(kg, (outch,), jnp.float32)
            beta = 0.1 * jax.random.normal(kb, (outch,), jnp.float32)
            r_mean = 0.1 * jax.random.normal(km, (outch,), jnp.float32)
            r_var = 0.5 + jax.random.uniform(kv, (outch,), jnp.float32)
            scale = gamma / jnp.sqrt(r_var + eps)
            bias = beta - r_mean * scale
            self.ref_params.append((w, scale, bias))

            # Tight packing: links' REAL channels are packed back-to-back; only
            # the total (and K = 9 * total) is padded to a lane multiple -- no
            # per-link 128 padding of the MXU K dimension.
            src_ch = [src_channels(k) for k in link]
            assert sum(src_ch) == inch
            P = _round_up(inch, 128)
            cout_pad = _round_up(outch, 128)
            w_pad = jnp.pad(w, ((0, 0), (0, 0),
                                (0, P - inch), (0, cout_pad - outch)))
            w_slab = w_pad.reshape(9 * P, cout_pad).astype(jnp.bfloat16)
            scale_pad = jnp.pad(scale, (0, cout_pad - outch)).reshape(1, cout_pad)
            bias_pad = jnp.pad(bias, (0, cout_pad - outch)).reshape(1, cout_pad)
            self.kernel_params.append((src_ch, w_slab, scale_pad, bias_pad))

            if i % 2 == 0 or i == n_layers - 1:
                self.out_channels += outch

    def get_out_ch(self):
        return self.out_channels

    def __call__(self, x_nchw):
        N, C, H, W = x_nchw.shape
        assert C == self.in_channels
        # NCHW -> NHWC, channel-pad to 128 (lane dense), bf16 inter-layer acts.
        x = jnp.transpose(x_nchw, (0, 2, 3, 1))
        cpad = _round_up(C, 128)
        x = jnp.pad(x, ((0, 0), (0, 0), (0, 0), (0, cpad - C))).astype(jnp.bfloat16)

        feats = [x]
        real_ch = [C]
        for li, (src_ch, w_slab, s_pad, b_pad) in enumerate(self.kernel_params):
            srcs = [feats[k] for k in self.links[li]]        # no HBM concat
            out = conv3x3_bn_relu6(srcs, src_ch, w_slab, s_pad, b_pad)
            feats.append(out)
            real_ch.append(self.layer_out_ch[li])

        t = len(feats)
        outs = []
        for i in range(t):
            if (i == 0 and self.keepBase) or i == t - 1 or i % 2 == 1:
                outs.append(feats[i][..., :real_ch[i]])      # stay bf16 here
        # TODO(synk): downstream consumers could take this bf16/NHWC directly;
        # cast once after the concat to match the PyTorch f32 output dtype.
        out = jnp.concatenate(outs, axis=-1).astype(jnp.float32)
        return jnp.transpose(out, (0, 3, 1, 2))              # back to NCHW


# ----------------------------------------------------------------------------
# Pure-JAX reference (same bf16 inter-layer numerics) for a correctness check
# ----------------------------------------------------------------------------
def _ref_forward(block, x_nchw):
    x = jnp.transpose(x_nchw, (0, 2, 3, 1)).astype(jnp.bfloat16)
    layers_ = [x]
    for li, (w, scale, bias) in enumerate(block.ref_params):
        tin = [layers_[k] for k in block.links[li]]
        xin = jnp.concatenate(tin, axis=-1) if len(tin) > 1 else tin[0]
        y = jax.lax.conv_general_dilated(
            xin, w.astype(jnp.bfloat16), (1, 1), "SAME",
            dimension_numbers=("NHWC", "HWIO", "NHWC"),
            preferred_element_type=jnp.float32)
        y = y * scale.reshape(1, 1, 1, -1) + bias.reshape(1, 1, 1, -1)
        y = jnp.clip(y, 0.0, 6.0).astype(jnp.bfloat16)
        layers_.append(y)
    t = len(layers_)
    outs = [layers_[i].astype(jnp.float32) for i in range(t)
            if (i == 0 and block.keepBase) or i == t - 1 or i % 2 == 1]
    return jnp.transpose(jnp.concatenate(outs, axis=-1), (0, 3, 1, 2))


if __name__ == "__main__":
    key = jax.random.PRNGKey(0)
    k_in, k_params = jax.random.split(key)

    # small HarDBlock: in_channels=4, growth_rate=6, grmul=1.7, n_layers=4
    N, C, H, W = 2, 4, 16, 16
    x_nchw = jax.random.normal(k_in, (N, C, H, W), jnp.float32)

    block = HarDBlockPallas(in_channels=C, growth_rate=6, grmul=1.7,
                            n_layers=4, keepBase=False, key=k_params)

    out = jax.block_until_ready(block(x_nchw))
    assert out.shape == (N, block.get_out_ch(), H, W), out.shape

    ref = jax.block_until_ready(_ref_forward(block, x_nchw))
    max_err = float(jnp.max(jnp.abs(out - ref)))
    assert jnp.allclose(out, ref, atol=2e-2, rtol=2e-2), max_err

    print("KERNEL_OK")
</pallas_src>

<mosaic_0001>
module attributes {stable_mosaic.version = 11 : i64} {
  func.func @kernel(%arg0: i32, %arg1: i32, %arg2: memref<1x16x16x128xbf16, #tpu.memory_space<vmem>>, %arg3: memref<1152x128xbf16, #tpu.memory_space<vmem>>, %arg4: memref<1x128xf32, #tpu.memory_space<vmem>>, %arg5: memref<1x128xf32, #tpu.memory_space<vmem>>, %arg6: memref<1x8x16x128xbf16, #tpu.memory_space<vmem>>, %arg7: memref<10x32x128xbf16, #tpu.memory_space<vmem>>) attributes {dimension_semantics = [#tpu.dimension_semantics<parallel>, #tpu.dimension_semantics<parallel>], iteration_bounds = array<i64: 2, 2>, scalar_prefetch = 0 : i64, scratch_operands = 1 : i64, tpu.core_type = #tpu.core_type<tc>, window_params = [{transform_indices = @transform_0, window_bounds = array<i64: 1, 16, 16, 128>}, {pipeline_mode = #tpu.pipeline_mode<synchronous>, transform_indices = @transform_1, window_bounds = array<i64: 1152, 128>}, {pipeline_mode = #tpu.pipeline_mode<synchronous>, transform_indices = @transform_2, window_bounds = array<i64: 1, 128>}, {pipeline_mode = #tpu.pipeline_mode<synchronous>, transform_indices = @transform_3, window_bounds = array<i64: 1, 128>}, {transform_indices = @transform_4, window_bounds = array<i64: 1, 8, 16, 128>}]} {
    %c8_i32 = arith.constant 8 : i32
    %0 = arith.muli %arg1, %c8_i32 : i32
    %1 = tpu.assume_multiple %0, 8 : i32
    %cst = arith.constant 0.000000e+00 : bf16
    %2 = vector.broadcast %cst : bf16 to vector<10x8x128xbf16>
    %c0 = arith.constant 0 : index
    %c0_0 = arith.constant 0 : index
    %c0_1 = arith.constant 0 : index
    %3 = vector.load %arg7[%c0, %c0_0, %c0_1] : memref<10x32x128xbf16, #tpu.memory_space<vmem>>, vector<10x8x128xbf16>
    tpu.vector_store %arg7[%c0, %c0_0, %c0_1], %2 {strides = array<i32>} : memref<10x32x128xbf16, #tpu.memory_space<vmem>>, vector<10x8x128xbf16>,
    %c0_2 = arith.constant 0 : index
    %c24 = arith.constant 24 : index
    %c0_3 = arith.constant 0 : index
    %4 = vector.load %arg7[%c0_2, %c24, %c0_3] : memref<10x32x128xbf16, #tpu.memory_space<vmem>>, vector<10x8x128xbf16>
    tpu.vector_store %arg7[%c0_2, %c24, %c0_3], %2 {strides = array<i32>} : memref<10x32x128xbf16, #tpu.memory_space<vmem>>, vector<10x8x128xbf16>,
    %c0_4 = arith.constant 0 : index
    %5 = arith.index_cast %1 : i32 to index
    %c0_5 = arith.constant 0 : index
    %c0_6 = arith.constant 0 : index
    %6 = vector.load %arg2[%c0_4, %5, %c0_5, %c0_6] : memref<1x16x16x128xbf16, #tpu.memory_space<vmem>>, vector<1x8x16x128xbf16>
    %7 = vector.shape_cast %6 : vector<1x8x16x128xbf16> to vector<8x16x128xbf16>
    %c1 = arith.constant 1 : index
    %c8 = arith.constant 8 : index
    %c0_7 = arith.constant 0 : index
    %8 = vector.load %arg7[%c1, %c8, %c0_7] : memref<10x32x128xbf16, #tpu.memory_space<vmem>>, vector<8x16x128xbf16>
    tpu.vector_store %arg7[%c1, %c8, %c0_7], %7 {strides = array<i32>} : memref<10x32x128xbf16, #tpu.memory_space<vmem>>, vector<8x16x128xbf16>,
    %c0_i32 = arith.constant 0 : i32
    %9 = arith.cmpi eq, %arg1, %c0_i32 : i32
    %10 = arith.extui %9 : i1 to i32
    %c0_i32_8 = arith.constant 0 : i32
    %11 = arith.cmpi ne, %10, %c0_i32_8 : i32
    scf.if %11 {
      %cst_52 = arith.constant 0.000000e+00 : bf16
      %85 = vector.broadcast %cst_52 : bf16 to vector<1x16x128xbf16>
      %c0_53 = arith.constant 0 : index
      %c8_54 = arith.constant 8 : index
      %c0_55 = arith.constant 0 : index
      %86 = vector.load %arg7[%c0_53, %c8_54, %c0_55] : memref<10x32x128xbf16, #tpu.memory_space<vmem>>, vector<1x16x128xbf16>
      tpu.vector_store %arg7[%c0_53, %c8_54, %c0_55], %85 {strides = array<i32>} : memref<10x32x128xbf16, #tpu.memory_space<vmem>>, vector<1x16x128xbf16>,
    } else {
    }
    %c0_i32_9 = arith.constant 0 : i32
    %12 = arith.cmpi sgt, %arg1, %c0_i32_9 : i32
    %13 = arith.extui %12 : i1 to i32
    %c0_i32_10 = arith.constant 0 : i32
    %14 = arith.cmpi ne, %13, %c0_i32_10 : i32
    scf.if %14 {
      %c1_i32_52 = arith.constant 1 : i32
      %85 = arith.subi %1, %c1_i32_52 : i32
      %c0_53 = arith.constant 0 : index
      %86 = arith.index_cast %85 : i32 to index
      %c0_54 = arith.constant 0 : index
      %c0_55 = arith.constant 0 : index
      %87 = vector.load %arg2[%c0_53, %86, %c0_54, %c0_55] : memref<1x16x16x128xbf16, #tpu.memory_space<vmem>>, vector<1x1x16x128xbf16>
      %88 = vector.shape_cast %87 : vector<1x1x16x128xbf16> to vector<1x16x128xbf16>
      %c0_56 = arith.constant 0 : index
      %c8_57 = arith.constant 8 : index
      %c0_58 = arith.constant 0 : index
      %89 = vector.load %arg7[%c0_56, %c8_57, %c0_58] : memref<10x32x128xbf16, #tpu.memory_space<vmem>>, vector<1x16x128xbf16>
      tpu.vector_store %arg7[%c0_56, %c8_57, %c0_58], %88 {strides = array<i32>} : memref<10x32x128xbf16, #tpu.memory_space<vmem>>, vector<1x16x128xbf16>,
    } else {
    }
    %c1_i32 = arith.constant 1 : i32
    %15 = arith.cmpi eq, %arg1, %c1_i32 : i32
    %16 = arith.extui %15 : i1 to i32
    %c0_i32_11 = arith.constant 0 : i32
    %17 = arith.cmpi ne, %16, %c0_i32_11 : i32
    scf.if %17 {
      %cst_52 = arith.constant 0.000000e+00 : bf16
      %85 = vector.broadcast %cst_52 : bf16 to vector<1x16x128xbf16>
      %c9 = arith.constant 9 : index
      %c8_53 = arith.constant 8 : index
      %c0_54 = arith.constant 0 : index
      %86 = vector.load %arg7[%c9, %c8_53, %c0_54] : memref<10x32x128xbf16, #tpu.memory_space<vmem>>, vector<1x16x128xbf16>
      tpu.vector_store %arg7[%c9, %c8_53, %c0_54], %85 {strides = array<i32>} : memref<10x32x128xbf16, #tpu.memory_space<vmem>>, vector<1x16x128xbf16>,
    } else {
    }
    %c1_i32_12 = arith.constant 1 : i32
    %18 = arith.cmpi slt, %arg1, %c1_i32_12 : i32
    %19 = arith.extui %18 : i1 to i32
    %c0_i32_13 = arith.constant 0 : i32
    %20 = arith.cmpi ne, %19, %c0_i32_13 : i32
    scf.if %20 {
      %c8_i32_52 = arith.constant 8 : i32
      %85 = arith.addi %1, %c8_i32_52 : i32
      %c0_53 = arith.constant 0 : index
      %86 = arith.index_cast %85 : i32 to index
      %c0_54 = arith.constant 0 : index
      %c0_55 = arith.constant 0 : index
      %87 = vector.load %arg2[%c0_53, %86, %c0_54, %c0_55] : memref<1x16x16x128xbf16, #tpu.memory_space<vmem>>, vector<1x1x16x128xbf16>
      %88 = vector.shape_cast %87 : vector<1x1x16x128xbf16> to vector<1x16x128xbf16>
      %c9 = arith.constant 9 : index
      %c8_56 = arith.constant 8 : index
      %c0_57 = arith.constant 0 : index
      %89 = vector.load %arg7[%c9, %c8_56, %c0_57] : memref<10x32x128xbf16, #tpu.memory_space<vmem>>, vector<1x16x128xbf16>
      tpu.vector_store %arg7[%c9, %c8_56, %c0_57], %88 {strides = array<i32>} : memref<10x32x128xbf16, #tpu.memory_space<vmem>>, vector<1x16x128xbf16>,
    } else {
    }
    %cst_14 = arith.constant 0.000000e+00 : f32
    %21 = vector.broadcast %cst_14 : f32 to vector<128x128xf32>
    %c0_15 = arith.constant 0 : index
    %c0_16 = arith.constant 0 : index
    %c0_17 = arith.constant 0 : index
    %22 = vector.load %arg7[%c0_15, %c0_16, %c0_17] : memref<10x32x128xbf16, #tpu.memory_space<vmem>>, vector<8x32x128xbf16>
    %23 = vector.extract_strided_slice %22 {offsets = [0, 7, 0], sizes = [8, 16, 128], strides = [1, 1, 1]} : vector<8x32x128xbf16> to vector<8x16x128xbf16>
    %24 = vector.shape_cast %23 : vector<8x16x128xbf16> to vector<128x128xbf16>
    %c0_18 = arith.constant 0 : index
    %c0_19 = arith.constant 0 : index
    %25 = vector.load %arg3[%c0_18, %c0_19] : memref<1152x128xbf16, #tpu.memory_space<vmem>>, vector<128x128xbf16>
    %cst_20 = arith.constant dense<0.000000e+00> : vector<128x128xf32>
    %26 = tpu.matmul %24, %25, %cst_20 {dimension_numbers = #tpu.dot_dimension_numbers<[1], [0], [0], [1], [0, 0, 1, 1], [], []>} : vector<128x128xbf16>, vector<128x128xbf16>, vector<128x128xf32> -> vector<128x128xf32>
    %27 = arith.addf %21, %26 : vector<128x128xf32>
    %28 = vector.extract_strided_slice %22 {offsets = [0, 8, 0], sizes = [8, 16, 128], strides = [1, 1, 1]} : vector<8x32x128xbf16> to vector<8x16x128xbf16>
    %29 = vector.shape_cast %28 : vector<8x16x128xbf16> to vector<128x128xbf16>
    %c128 = arith.constant 128 : index
    %c0_21 = arith.constant 0 : index
    %30 = vector.load %arg3[%c128, %c0_21] : memref<1152x128xbf16, #tpu.memory_space<vmem>>, vector<128x128xbf16>
    %cst_22 = arith.constant dense<0.000000e+00> : vector<128x128xf32>
    %31 = tpu.matmul %29, %30, %cst_22 {dimension_numbers = #tpu.dot_dimension_numbers<[1], [0], [0], [1], [0, 0, 1, 1], [], []>} : vector<128x128xbf16>, vector<128x128xbf16>, vector<128x128xf32> -> vector<128x128xf32>
    %32 = arith.addf %27, %31 : vector<128x128xf32>
    %33 = vector.extract_strided_slice %22 {offsets = [0, 9, 0], sizes = [8, 16, 128], strides = [1, 1, 1]} : vector<8x32x128xbf16> to vector<8x16x128xbf16>
    %34 = vector.shape_cast %33 : vector<8x16x128xbf16> to vector<128x128xbf16>
    %c256 = arith.constant 256 : index
    %c0_23 = arith.constant 0 : index
    %35 = vector.load %arg3[%c256, %c0_23] : memref<1152x128xbf16, #tpu.memory_space<vmem>>, vector<128x128xbf16>
    %cst_24 = arith.constant dense<0.000000e+00> : vector<128x128xf32>
    %36 = tpu.matmul %34, %35, %cst_24 {dimension_numbers = #tpu.dot_dimension_numbers<[1], [0], [0], [1], [0, 0, 1, 1], [], []>} : vector<128x128xbf16>, vector<128x128xbf16>, vector<128x128xf32> -> vector<128x128xf32>
    %37 = arith.addf %32, %36 : vector<128x128xf32>
    %c1_25 = arith.constant 1 : index
    %c0_26 = arith.constant 0 : index
    %c0_27 = arith.constant 0 : index
    %38 = vector.load %arg7[%c1_25, %c0_26, %c0_27] : memref<10x32x128xbf16, #tpu.memory_space<vmem>>, vector<8x32x128xbf16>
    %39 = vector.extract_strided_slice %38 {offsets = [0, 7, 0], sizes = [8, 16, 128], strides = [1, 1, 1]} : vector<8x32x128xbf16> to vector<8x16x128xbf16>
    %40 = vector.shape_cast %39 : vector<8x16x128xbf16> to vector<128x128xbf16>
    %c384 = arith.constant 384 : index
    %c0_28 = arith.constant 0 : index
    %41 = vector.load %arg3[%c384, %c0_28] : memref<1152x128xbf16, #tpu.memory_space<vmem>>, vector<128x128xbf16>
    %cst_29 = arith.constant dense<0.000000e+00> : vector<128x128xf32>
    %42 = tpu.matmul %40, %41, %cst_29 {dimension_numbers = #tpu.dot_dimension_numbers<[1], [0], [0], [1], [0, 0, 1, 1], [], []>} : vector<128x128xbf16>, vector<128x128xbf16>, vector<128x128xf32> -> vector<128x128xf32>
    %43 = arith.addf %37, %42 : vector<128x128xf32>
    %44 = vector.extract_strided_slice %38 {offsets = [0, 8, 0], sizes = [8, 16, 128], strides = [1, 1, 1]} : vector<8x32x128xbf16> to vector<8x16x128xbf16>
    %45 = vector.shape_cast %44 : vector<8x16x128xbf16> to vector<128x128xbf16>
    %c512 = arith.constant 512 : index
    %c0_30 = arith.constant 0 : index
    %46 = vector.load %arg3[%c512, %c0_30] : memref<1152x128xbf16, #tpu.memory_space<vmem>>, vector<128x128xbf16>
    %cst_31 = arith.constant dense<0.000000e+00> : vector<128x128xf32>
    %47 = tpu.matmul %45, %46, %cst_31 {dimension_numbers = #tpu.dot_dimension_numbers<[1], [0], [0], [1], [0, 0, 1, 1], [], []>} : vector<128x128xbf16>, vector<128x128xbf16>, vector<128x128xf32> -> vector<128x128xf32>
    %48 = arith.addf %43, %47 : vector<128x128xf32>
    %49 = vector.extract_strided_slice %38 {offsets = [0, 9, 0], sizes = [8, 16, 128], strides = [1, 1, 1]} : vector<8x32x128xbf16> to vector<8x16x128xbf16>
    %50 = vector.shape_cast %49 : vector<8x16x128xbf16> to vector<128x128xbf16>
    %c640 = arith.constant 640 : index
    %c0_32 = arith.constant 0 : index
    %51 = vector.load %arg3[%c640, %c0_32] : memref<1152x128xbf16, #tpu.memory_space<vmem>>, vector<128x128xbf16>
    %cst_33 = arith.constant dense<0.000000e+00> : vector<128x128xf32>
    %52 = tpu.matmul %50, %51, %cst_33 {dimension_numbers = #tpu.dot_dimension_numbers<[1], [0], [0], [1], [0, 0, 1, 1], [], []>} : vector<128x128xbf16>, vector<128x128xbf16>, vector<128x128xf32> -> vector<128x128xf32>
    %53 = arith.addf %48, %52 : vector<128x128xf32>
    %c2 = arith.constant 2 : index
    %c0_34 = arith.constant 0 : index
    %c0_35 = arith.constant 0 : index
    %54 = vector.load %arg7[%c2, %c0_34, %c0_35] : memref<10x32x128xbf16, #tpu.memory_space<vmem>>, vector<8x32x128xbf16>
    %55 = vector.extract_strided_slice %54 {offsets = [0, 7, 0], sizes = [8, 16, 128], strides = [1, 1, 1]} : vector<8x32x128xbf16> to vector<8x16x128xbf16>
    %56 = vector.shape_cast %55 : vector<8x16x128xbf16> to vector<128x128xbf16>
    %c768 = arith.constant 768 : index
    %c0_36 = arith.constant 0 : index
    %57 = vector.load %arg3[%c768, %c0_36] : memref<1152x128xbf16, #tpu.memory_space<vmem>>, vector<128x128xbf16>
    %cst_37 = arith.constant dense<0.000000e+00> : vector<128x128xf32>
    %58 = tpu.matmul %56, %57, %cst_37 {dimension_numbers = #tpu.dot_dimension_numbers<[1], [0], [0], [1], [0, 0, 1, 1], [], []>} : vector<128x128xbf16>, vector<128x128xbf16>, vector<128x128xf32> -> vector<128x128xf32>
    %59 = arith.addf %53, %58 : vector<128x128xf32>
    %60 = vector.extract_strided_slice %54 {offsets = [0, 8, 0], sizes = [8, 16, 128], strides = [1, 1, 1]} : vector<8x32x128xbf16> to vector<8x16x128xbf16>
    %61 = vector.shape_cast %60 : vector<8x16x128xbf16> to vector<128x128xbf16>
    %c896 = arith.constant 896 : index
    %c0_38 = arith.constant 0 : index
    %62 = vector.load %arg3[%c896, %c0_38] : memref<1152x128xbf16, #tpu.memory_space<vmem>>, vector<128x128xbf16>
    %cst_39 = arith.constant dense<0.000000e+00> : vector<128x128xf32>
    %63 = tpu.matmul %61, %62, %cst_39 {dimension_numbers = #tpu.dot_dimension_numbers<[1], [0], [0], [1], [0, 0, 1, 1], [], []>} : vector<128x128xbf16>, vector<128x128xbf16>, vector<128x128xf32> -> vector<128x128xf32>
    %64 = arith.addf %59, %63 : vector<128x128xf32>
    %65 = vector.extract_strided_slice %54 {offsets = [0, 9, 0], sizes = [8, 16, 128], strides = [1, 1, 1]} : vector<8x32x128xbf16> to vector<8x16x128xbf16>
    %66 = vector.shape_cast %65 : vector<8x16x128xbf16> to vector<128x128xbf16>
    %c1024 = arith.constant 1024 : index
    %c0_40 = arith.constant 0 : index
    %67 = vector.load %arg3[%c1024, %c0_40] : memref<1152x128xbf16, #tpu.memory_space<vmem>>, vector<128x128xbf16>
    %cst_41 = arith.constant dense<0.000000e+00> : vector<128x128xf32>
    %68 = tpu.matmul %66, %67, %cst_41 {dimension_numbers = #tpu.dot_dimension_numbers<[1], [0], [0], [1], [0, 0, 1, 1], [], []>} : vector<128x128xbf16>, vector<128x128xbf16>, vector<128x128xf32> -> vector<128x128xf32>
    %69 = arith.addf %64, %68 : vector<128x128xf32>
    %c0_42 = arith.constant 0 : index
    %c0_43 = arith.constant 0 : index
    %70 = vector.load %arg4[%c0_42, %c0_43] : memref<1x128xf32, #tpu.memory_space<vmem>>, vector<1x128xf32>
    %71 = vector.broadcast %70 : vector<1x128xf32> to vector<128x128xf32>
    %72 = arith.mulf %69, %71 : vector<128x128xf32>
    %c0_44 = arith.constant 0 : index
    %c0_45 = arith.constant 0 : index
    %73 = vector.load %arg5[%c0_44, %c0_45] : memref<1x128xf32, #tpu.memory_space<vmem>>, vector<1x128xf32>
    %74 = vector.broadcast %73 : vector<1x128xf32> to vector<128x128xf32>
    %75 = arith.addf %72, %74 : vector<128x128xf32>
    %cst_46 = arith.constant 0.000000e+00 : f32
    %cst_47 = arith.constant 6.000000e+00 : f32
    %76 = vector.broadcast %cst_46 : f32 to vector<128x128xf32>
    %77 = arith.maximumf %76, %75 : vector<128x128xf32>
    %78 = vector.broadcast %cst_47 : f32 to vector<128x128xf32>
    %79 = arith.minimumf %78, %77 : vector<128x128xf32>
    %80 = vector.shape_cast %79 : vector<128x128xf32> to vector<8x16x128xf32>
    %81 = arith.truncf %80 : vector<8x16x128xf32> to vector<8x16x128xbf16>
    %c0_48 = arith.constant 0 : index
    %c0_49 = arith.constant 0 : index
    %c0_50 = arith.constant 0 : index
    %c0_51 = arith.constant 0 : index
    %82 = vector.load %arg6[%c0_48, %c0_49, %c0_50, %c0_51] : memref<1x8x16x128xbf16, #tpu.memory_space<vmem>>, vector<1x8x16x128xbf16>
    %83 = vector.shape_cast %82 : vector<1x8x16x128xbf16> to vector<8x16x128xbf16>
    %84 = vector.shape_cast %81 : vector<8x16x128xbf16> to vector<1x8x16x128xbf16>
    tpu.vector_store %arg6[%c0_48, %c0_49, %c0_50, %c0_51], %84 {strides = array<i32>} : memref<1x8x16x128xbf16, #tpu.memory_space<vmem>>, vector<1x8x16x128xbf16>,
    return
  }
  func.func @transform_0(%arg0: i32, %arg1: i32) -> (i32, i32, i32, i32) {
    %c0_i32 = arith.constant 0 : i32
    %c0_i32_0 = arith.constant 0 : i32
    %c0_i32_1 = arith.constant 0 : i32
    %c0_i32_2 = arith.constant 0 : i32
    return %arg0, %c0_i32, %c0_i32_0, %c0_i32_1 : i32, i32, i32, i32
  }
  func.func @transform_1(%arg0: i32, %arg1: i32) -> (i32, i32) {
    %c0_i32 = arith.constant 0 : i32
    %c0_i32_0 = arith.constant 0 : i32
    %c0_i32_1 = arith.constant 0 : i32
    return %c0_i32, %c0_i32_0 : i32, i32
  }
  func.func @transform_2(%arg0: i32, %arg1: i32) -> (i32, i32) {
    %c0_i32 = arith.constant 0 : i32
    %c0_i32_0 = arith.constant 0 : i32
    %c0_i32_1 = arith.constant 0 : i32
    return %c0_i32, %c0_i32_0 : i32, i32
  }
  func.func @transform_3(%arg0: i32, %arg1: i32) -> (i32, i32) {
    %c0_i32 = arith.constant 0 : i32
    %c0_i32_0 = arith.constant 0 : i32
    %c0_i32_1 = arith.constant 0 : i32
    return %c0_i32, %c0_i32_0 : i32, i32
  }
  func.func @transform_4(%arg0: i32, %arg1: i32) -> (i32, i32, i32, i32) {
    %c0_i32 = arith.constant 0 : i32
    %c0_i32_0 = arith.constant 0 : i32
    %c0_i32_1 = arith.constant 0 : i32
    return %arg0, %arg1, %c0_i32, %c0_i32_0 : i32, i32, i32, i32
  }
}

</mosaic_0001>

<llo_original>
// kernel: tpu_custom_call.1
$region0: #{tpu_custom_call.1}
  #allocation0 [shape = 'u32[]', space=smem, size = 0x4, offset = 0x4, fixed_abs, tag = 'smem constant byte address 0x4 - core index']
  #allocation1 [shape = 'u32[72,128]{1,0:T(1,128)}', space=vmem, size = 0x9000, scoped, tag = 'internal scratch']
  #allocation2 [shape = 'bf16[10,32,128]{2,1,0:T(8,128)(2,1)}', space=vmem, size = 0x14000, scoped, tag = 'scratch operand']
  %s0 = inlined_call_operand.hbm [shape: bf16[2,16,16,128], index: 0, kind: input, shape index: {}]
  %s1 = inlined_call_operand.hbm [shape: bf16[1152,128], index: 1, kind: input, shape index: {}]
  %s2 = inlined_call_operand.vmem [shape: f32[1,128], index: 2, kind: input, shape index: {}]
  %s3 = inlined_call_operand.vmem [shape: f32[1,128], index: 3, kind: input, shape index: {}]
  %s4 = inlined_call_operand.hbm [shape: bf16[2,16,16,128], index: 4, kind: output, shape index: {}]
  %s5 = sld [smem:[#allocation0]]
  $region73: #{tpu_custom_call.1} parent=0
    _
  %s7 = ssub.s32 1, %s5
  %s8 = scalar_select 0, %s7, %s5
  $region1: #{tpu_custom_call.1} parent=0
    #allocation3 [shape = 'u8[131072]{0}', space=vmem, size = 0x20000, scoped, tag = 'input window, operand 0']
    #allocation4 [shape = 's32[2]{0}', space=sflag, size = 0x8, scoped, tag = 'scoped memory for tpu_custom_call.1']
    #allocation5 [shape = 's32[2]{0}', space=sflag, size = 0x8, scoped, tag = 'scoped memory for tpu_custom_call.1']
    #allocation6 [shape = 'u8[294912]{0}', space=vmem, size = 0x48000, scoped, tag = 'input window, operand 1, single buffered']
    #allocation7 [shape = 's32[1]{0}', space=sflag, size = 0x4, scoped, tag = 'scoped memory for tpu_custom_call.1']
    #allocation8 [shape = 'u8[65536]{0}', space=vmem, size = 0x10000, scoped, tag = 'output window, operand 0']
    %9 = vsyncpa [#allocation4], 0
    %s10 = scalar_lea.sflag [#allocation4], 1
    %11 = vsyncpa %s10, 0
    %12 = vsyncpa [#allocation7], 0
    %13 = vsyncpa [#allocation5], 0
    %s14 = scalar_lea.sflag [#allocation5], 1
    %15 = vsyncpa %s14, 0
    loop: start=0, step=1, limit=6
    $region2: #{tpu_custom_call.1} parent=1 // loop_pre_header
      _
    $region3: #{tpu_custom_call.1} parent=1 // loop_header
      %s17 = sphi 0, %s21
      %p18 = scmp.ge.s32.totalorder %s17, 6
      %s24 = sphi 0, %s36
      %s25 = sphi 0, %s32
      %s26 = sphi 0, %s24
      %s27 = sphi 0, %s25
      %s28 = sphi 0, %s26
      %s29 = sphi 0, %s27
      %s39 = sphi 0, %s41
      %s42 = sphi 0, %s39
      %s43 = sphi 0, %s42
      %s59 = sphi 0, %s43
      %s63 = sphi 0, %s63
      %s65 = sphi 0, %s63
      %s66 = sphi 0, %s65
      %s80 = sphi 0, %s66
      %s84 = sphi 0, %s84
      %s86 = sphi 0, %s84
      %s87 = sphi 0, %s86
      %s101 = sphi 0, %s87
      %s105 = sphi 0, %s105
      %s107 = sphi 0, %s105
      %s108 = sphi 0, %s107
      %s122 = sphi 0, %s108
      %s130 = sphi 0, %s132
      %s133 = sphi 0, %s130
      %s134 = sphi 0, %s133
      %s150 = sphi 0, %s134
    $region4: #{tpu_custom_call.1} parent=1 // loop_header_branch
      %20 = sbr.rel (%p18) target = $region8
    $region5: #{tpu_custom_call.1} parent=1 // loop_body
      %s22 = ssub.s32 %s17, 1
      %s23 = ssub.s32 %s17, 2
      %s30 = sadd.s32 1, %s25
      %p31 = scmp.ge.s32.totalorder %s30, 2
      %s32 = scalar_select %p31, 0, %s30
      %s33 = sadd.s32 1, %s24
      %s34 = scalar_select %p31, %s33, %s24
      %p35 = scmp.ge.s32.totalorder %s34, 2
      %s36 = scalar_select %p35, 0, %s34
      %s37 = ssub.s32 %s24, %s36
      %p38 = scmp.eq.s32.totalorder %s37, 0
      %s40 = sadd.s32 %s39, 1
      %s41 = scalar_select %p38, %s39, %s40
      %p44 = pneg %p38
      %p45 = scmp.eq.s32.totalorder %s17, 3
      %p46 = por %p44, %p45
      %p47 = scmp.ne.s32.totalorder %s39, %s42
      %p48 = scmp.eq.s32.totalorder %s17, 0
      %p49 = por %p47, %p48
      %p50 = scmp.ne.s32.totalorder %s39, %s42
      %p51 = scmp.eq.s32.totalorder %s22, 3
      %p52 = por %p50, %p51
      %p53 = scmp.ne.s32.totalorder %s42, %s43
      %p54 = scmp.eq.s32.totalorder %s22, 0
      %p55 = por %p53, %p54
      %p56 = scmp.ne.s32.totalorder %s42, %s43
      %p57 = scmp.eq.s32.totalorder %s23, 3
      %p58 = por %p56, %p57
      %p60 = scmp.ne.s32.totalorder %s43, %s59
      %p61 = scmp.eq.s32.totalorder %s23, 0
      %p62 = por %p60, %p61
      %s64 = sadd.s32 %s63, 1
      %p67 = scmp.eq.s32.totalorder %s17, 3
      %p68 = scmp.ne.s32.totalorder %s63, %s65
      %p69 = scmp.eq.s32.totalorder %s17, 0
      %p70 = por %p68, %p69
      %p71 = scmp.ne.s32.totalorder %s63, %s65
      %p72 = scmp.eq.s32.totalorder %s22, 3
      %p73 = por %p71, %p72
      %p74 = scmp.ne.s32.totalorder %s65, %s66
      %p75 = scmp.eq.s32.totalorder %s22, 0
      %p76 = por %p74, %p75
      %p77 = scmp.ne.s32.totalorder %s65, %s66
      %p78 = scmp.eq.s32.totalorder %s23, 3
      %p79 = por %p77, %p78
      %p81 = scmp.ne.s32.totalorder %s66, %s80
      %p82 = scmp.eq.s32.totalorder %s23, 0
      %p83 = por %p81, %p82
      %s85 = sadd.s32 %s84, 1
      %p88 = scmp.eq.s32.totalorder %s17, 3
      %p89 = scmp.ne.s32.totalorder %s84, %s86
      %p90 = scmp.eq.s32.totalorder %s17, 0
      %p91 = por %p89, %p90
      %p92 = scmp.ne.s32.totalorder %s84, %s86
      %p93 = scmp.eq.s32.totalorder %s22, 3
      %p94 = por %p92, %p93
      %p95 = scmp.ne.s32.totalorder %s86, %s87
      %p96 = scmp.eq.s32.totalorder %s22, 0
      %p97 = por %p95, %p96
      %p98 = scmp.ne.s32.totalorder %s86, %s87
      %p99 = scmp.eq.s32.totalorder %s23, 3
      %p100 = por %p98, %p99
      %p102 = scmp.ne.s32.totalorder %s87, %s101
      %p103 = scmp.eq.s32.totalorder %s23, 0
      %p104 = por %p102, %p103
      %s106 = sadd.s32 %s105, 1
      %p109 = scmp.eq.s32.totalorder %s17, 3
      %p110 = scmp.ne.s32.totalorder %s105, %s107
      %p111 = scmp.eq.s32.totalorder %s17, 0
      %p112 = por %p110, %p111
      %p113 = scmp.ne.s32.totalorder %s105, %s107
      %p114 = scmp.eq.s32.totalorder %s22, 3
      %p115 = por %p113, %p114
      %p116 = scmp.ne.s32.totalorder %s107, %s108
      %p117 = scmp.eq.s32.totalorder %s22, 0
      %p118 = por %p116, %p117
      %p119 = scmp.ne.s32.totalorder %s107, %s108
      %p120 = scmp.eq.s32.totalorder %s23, 3
      %p121 = por %p119, %p120
      %p123 = scmp.ne.s32.totalorder %s108, %s122
      %p124 = scmp.eq.s32.totalorder %s23, 0
      %p125 = por %p123, %p124
      %s126 = ssub.s32 %s24, %s36
      %s127 = ssub.s32 %s25, %s32
      %s128 = sor.u32 %s126, %s127
      %p129 = scmp.eq.s32.totalorder %s128, 0
      %s131 = sadd.s32 %s130, 1
      %s132 = scalar_select %p129, %s130, %s131
      %p135 = pneg %p129
      %p136 = scmp.eq.s32.totalorder %s17, 3
      %p137 = por %p135, %p136
      %p138 = scmp.ne.s32.totalorder %s130, %s133
      %p139 = scmp.eq.s32.totalorder %s17, 0
      %p140 = por %p138, %p139
      %p141 = scmp.ne.s32.totalorder %s130, %s133
      %p142 = scmp.eq.s32.totalorder %s22, 3
      %p143 = por %p141, %p142
      %p144 = scmp.ne.s32.totalorder %s133, %s134
      %p145 = scmp.eq.s32.totalorder %s22, 0
      %p146 = por %p144, %p145
      %p147 = scmp.ne.s32.totalorder %s133, %s134
      %p148 = scmp.eq.s32.totalorder %s23, 3
      %p149 = por %p147, %p148
      %p151 = scmp.ne.s32.totalorder %s134, %s150
      %p152 = scmp.eq.s32.totalorder %s23, 0
      %p153 = por %p151, %p152
      %p154 = scmp.le.s32.totalorder 1, %s17
      %p155 = scmp.lt.s32.totalorder %s17, 5
      %p156 = pnand %p154, %p155
      %p157 = pneg %p156
      // Predicated region
      $region9: #{tpu_custom_call.1} parent=5 // pred_check
        _
      $region10: #{tpu_custom_call.1} parent=5 // pred_check_branch
        %159 = sbr.rel (%p156) target = $region12
      $region11: #{tpu_custom_call.1} parent=5 // pred_region
        %s160 = ssub.s32 %s17, 1
        // Predicated region
        $region13: #{tpu_custom_call.1} parent=11 // pred_check
          %p161 = pneg %p76
        $region14: #{tpu_custom_call.1} parent=11 // pred_check_branch
          %163 = sbr.rel (%p161) target = $region16
        $region15: #{tpu_custom_call.1} parent=11 // pred_region
          %165 = vsyncadd [#allocation7], 0
          %s166 = sshll.u32 %s1, 4
          %s167 = int_to_ptr.hbm [resolvable:$true] %s166
          %s168 = sshll.u32 [#allocation6], 4
          %s169 = int_to_ptr.vmem [resolvable:$true] %s168
          %174 = dma.hbm_to_vmem [thread:$0]  %s167, 9216, %s169, [#allocation7], 64, 64, 4
        $region16: #{tpu_custom_call.1} parent=11 // pred_fallthru
          _
        // Predicated region
        $region17: #{tpu_custom_call.1} parent=11 // pred_check
          %p175 = pneg %p97
        $region18: #{tpu_custom_call.1} parent=11 // pred_check_branch
          %177 = sbr.rel (%p175) target = $region20
        $region19: #{tpu_custom_call.1} parent=11 // pred_region
          _
        $region20: #{tpu_custom_call.1} parent=11 // pred_fallthru
          _
        // Predicated region
        $region21: #{tpu_custom_call.1} parent=11 // pred_check
          %p178 = pneg %p118
        $region22: #{tpu_custom_call.1} parent=11 // pred_check_branch
          %180 = sbr.rel (%p178) target = $region24
        $region23: #{tpu_custom_call.1} parent=11 // pred_region
          _
        $region24: #{tpu_custom_call.1} parent=11 // pred_fallthru
          _
      $region12: #{tpu_custom_call.1} parent=5 // pred_fallthru
        _
      %p181 = scmp.lt.s32.totalorder %s17, 4
      // Predicated region
      $region25: #{tpu_custom_call.1} parent=5 // pred_check
        %p182 = pneg %p181
      $region26: #{tpu_custom_call.1} parent=5 // pred_check_branch
        %184 = sbr.rel (%p182) target = $region28
      $region27: #{tpu_custom_call.1} parent=5 // pred_region
        // Predicated region
        $region29: #{tpu_custom_call.1} parent=27 // pred_check
          %p185 = pneg %p49
        $region30: #{tpu_custom_call.1} parent=27 // pred_check_branch
          %187 = sbr.rel (%p185) target = $region32
        $region31: #{tpu_custom_call.1} parent=27 // pred_region
          %s188 = sand.u32 %s39, 1
          %s189 = scalar_lea.sflag [#allocation4], %s188
          %s190 = sand.u32 %s39, 1
          %s191 = smul.addr %s190, 128
          %s192 = scalar_lea.vmem [#allocation3], %s191
          %194 = vsyncadd %s189, 0
          %s195 = smul.addr %s24, 32
          %s196 = smul.addr %s195, 4
          %s197 = scalar_lea.hbm %s0, %s196
          %s198 = sshll.u32 %s197, 4
          %s199 = int_to_ptr.hbm [resolvable:$true] %s198
          %s200 = sshll.u32 %s192, 4
          %s201 = int_to_ptr.vmem [resolvable:$true] %s200
          %206 = dma.hbm_to_vmem [thread:$0]  %s199, 2048, %s201, %s189, 64, 64, 4
        $region32: #{tpu_custom_call.1} parent=27 // pred_fallthru
          _
      $region28: #{tpu_custom_call.1} parent=5 // pred_fallthru
        _
      %p207 = scmp.le.s32.totalorder 1, %s17
      %p208 = scmp.lt.s32.totalorder %s17, 5
      %p209 = pnand %p207, %p208
      %p210 = pneg %p209
      // Predicated region
      $region33: #{tpu_custom_call.1} parent=5 // pred_check
        _
      $region34: #{tpu_custom_call.1} parent=5 // pred_check_branch
        %212 = sbr.rel (%p209) target = $region36
      $region35: #{tpu_custom_call.1} parent=5 // pred_region
        %s213 = ssub.s32 %s17, 1
        %s214 = sand.u32 %s42, 1
        %s215 = scalar_lea.sflag [#allocation4], %s214
        %s216 = sand.u32 %s42, 1
        %s217 = smul.addr %s216, 128
        %s218 = scalar_lea.vmem [#allocation3], %s217
        // Predicated region
        $region37: #{tpu_custom_call.1} parent=35 // pred_check
          %p219 = pneg %p55
        $region38: #{tpu_custom_call.1} parent=35 // pred_check_branch
          %221 = sbr.rel (%p219) target = $region40
        $region39: #{tpu_custom_call.1} parent=35 // pred_region
          %223 = dma.done %s215, 2048
        $region40: #{tpu_custom_call.1} parent=35 // pred_fallthru
          _
        // Predicated region
        $region41: #{tpu_custom_call.1} parent=35 // pred_check
          %p224 = pneg %p76
        $region42: #{tpu_custom_call.1} parent=35 // pred_check_branch
          %226 = sbr.rel (%p224) target = $region44
        $region43: #{tpu_custom_call.1} parent=35 // pred_region
          %228 = dma.done [#allocation7], 9216
        $region44: #{tpu_custom_call.1} parent=35 // pred_fallthru
          _
        %s229 = sand.u32 %s42, 1
        %s230 = scalar_lea.sflag [#allocation4], %s229
        %s231 = sand.u32 %s42, 1
        %s232 = smul.addr %s231, 128
        %s233 = scalar_lea.vmem [#allocation3], %s232
        %p234 = pneg %p55
        %p235 = pneg %p52
        %p236 = pneg %p76
        %p237 = pneg %p73
        %p238 = pneg %p97
        %p239 = pneg %p94
        %p240 = pneg %p118
        %p241 = pneg %p115
        %p242 = pneg %p146
        %p243 = pneg %p143
        %s244 = sand.u32 %s133, 1
        %s245 = scalar_lea.sflag [#allocation5], %s244
        %s246 = sand.u32 %s133, 1
        %s247 = smul.addr %s246, 64
        %s248 = scalar_lea.vmem [#allocation8], %s247
        %s249 = smul.u32 8, %s27
        %s251 = smul.u32 %s27, 8
        %252 = vst [vmem:[#allocation2] sm:$0xf] 0
        %253 = vst [vmem:[#allocation2 + $0x10] sm:$0xf] 0
        %254 = vst [vmem:[#allocation2 + $0x20] sm:$0xf] 0
        %255 = vst [vmem:[#allocation2 + $0x30] sm:$0xf] 0
        %256 = vst [vmem:[#allocation2 + $0x40] sm:$0xf] 0
        %257 = vst [vmem:[#allocation2 + $0x50] sm:$0xf] 0
        %258 = vst [vmem:[#allocation2 + $0x60] sm:$0xf] 0
        %259 = vst [vmem:[#allocation2 + $0x70] sm:$0xf] 0
        %260 = vst [vmem:[#allocation2 + $0x80] sm:$0xf] 0
        %261 = vst [vmem:[#allocation2 + $0x90] sm:$0xf] 0
        %262 = vst [vmem:[#allocation2 + $0xc] sm:$0xf] 0
        %263 = vst [vmem:[#allocation2 + $0x1c] sm:$0xf] 0
        %264 = vst [vmem:[#allocation2 + $0x2c] sm:$0xf] 0
        %265 = vst [vmem:[#allocation2 + $0x3c] sm:$0xf] 0
        %266 = vst [vmem:[#allocation2 + $0x4c] sm:$0xf] 0
        %267 = vst [vmem:[#allocation2 + $0x5c] sm:$0xf] 0
        %268 = vst [vmem:[#allocation2 + $0x6c] sm:$0xf] 0
        %269 = vst [vmem:[#allocation2 + $0x7c] sm:$0xf] 0
        %270 = vst [vmem:[#allocation2 + $0x8c] sm:$0xf] 0
        %271 = vst [vmem:[#allocation2 + $0x9c] sm:$0xf] 0
        %s272 = smul.u32 %s251, 2
        %s273 = smul.addr %s272, 4
        %s274 = scalar_lea.vmem %s218, %s273 [#allocation3]
        %v275 = vld [vmem:[%s274] sm:$0xf]
        %v276 = vld [vmem:[%s274 + $0x4] sm:$0xf]
        %v277 = vld [vmem:[%s274 + $0x8] sm:$0xf]
        %v278 = vld [vmem:[%s274 + $0xc] sm:$0xf]
        %v279 = vld [vmem:[%s274 + $0x10] sm:$0xf]
        %v280 = vld [vmem:[%s274 + $0x14] sm:$0xf]
        %v281 = vld [vmem:[%s274 + $0x18] sm:$0xf]
        %v282 = vld [vmem:[%s274 + $0x1c] sm:$0xf]
        %v283 = vld [vmem:[%s274 + $0x20] sm:$0xf]
        %v284 = vld [vmem:[%s274 + $0x24] sm:$0xf]
        %v285 = vld [vmem:[%s274 + $0x28] sm:$0xf]
        %v286 = vld [vmem:[%s274 + $0x2c] sm:$0xf]
        %v287 = vld [vmem:[%s274 + $0x30] sm:$0xf]
        %v288 = vld [vmem:[%s274 + $0x34] sm:$0xf]
        %v289 = vld [vmem:[%s274 + $0x38] sm:$0xf]
        %v290 = vld [vmem:[%s274 + $0x3c] sm:$0xf]
        %s291 = scalar_lea.vmem [#allocation2], 16
        %292 = vst [vmem:[%s291 + $0x4] sm:$0xf] %v275
        %293 = vst [vmem:[%s291 + $0x8] sm:$0xf] %v276
        %294 = vst [vmem:[%s291 + $0x14] sm:$0xf] %v277
        %295 = vst [vmem:[%s291 + $0x18] sm:$0xf] %v278
        %296 = vst [vmem:[%s291 + $0x24] sm:$0xf] %v279
        %297 = vst [vmem:[%s291 + $0x28] sm:$0xf] %v280
        %298 = vst [vmem:[%s291 + $0x34] sm:$0xf] %v281
        %299 = vst [vmem:[%s291 + $0x38] sm:$0xf] %v282
        %300 = vst [vmem:[%s291 + $0x44] sm:$0xf] %v283
        %301 = vst [vmem:[%s291 + $0x48] sm:$0xf] %v284
        %302 = vst [vmem:[%s291 + $0x54] sm:$0xf] %v285
        %303 = vst [vmem:[%s291 + $0x58] sm:$0xf] %v286
        %304 = vst [vmem:[%s291 + $0x64] sm:$0xf] %v287
        %305 = vst [vmem:[%s291 + $0x68] sm:$0xf] %v288
        %306 = vst [vmem:[%s291 + $0x74] sm:$0xf] %v289
        %307 = vst [vmem:[%s291 + $0x78] sm:$0xf] %v290
        %p308 = scmp.eq.s32.totalorder %s27, 0
        // Predicated region
        $region45: #{tpu_custom_call.1} parent=35 // pred_check
          %p309 = pneg %p308
        $region46: #{tpu_custom_call.1} parent=35 // pred_check_branch
          %311 = sbr.rel (%p309) target = $region48
        $region47: #{tpu_custom_call.1} parent=35 // pred_region
          %312 = vst [vmem:[#allocation2 + $0x4] sm:$0xf] 0
          %313 = vst [vmem:[#allocation2 + $0x8] sm:$0xf] 0
        $region48: #{tpu_custom_call.1} parent=35 // pred_fallthru
          _
        %p314 = scmp.gt.s32.totalorder %s27, 0
        // Predicated region
        $region49: #{tpu_custom_call.1} parent=35 // pred_check
          %p315 = pneg %p314
        $region50: #{tpu_custom_call.1} parent=35 // pred_check_branch
          %317 = sbr.rel (%p315) target = $region52
        $region51: #{tpu_custom_call.1} parent=35 // pred_region
          %s318 = ssub.s32 %s251, 1
          %s319 = smul.u32 %s318, 2
          %s320 = smul.addr %s319, 4
          %s321 = scalar_lea.vmem %s218, %s320 [#allocation3]
          %v322 = vld [vmem:[%s321] sm:$0xf]
          %v323 = vld [vmem:[%s321 + $0x4] sm:$0xf]
          %324 = vst [vmem:[#allocation2 + $0x4] sm:$0xf] %v322
          %325 = vst [vmem:[#allocation2 + $0x8] sm:$0xf] %v323
        $region52: #{tpu_custom_call.1} parent=35 // pred_fallthru
          _
        %p326 = scmp.eq.s32.totalorder %s27, 1
        // Predicated region
        $region53: #{tpu_custom_call.1} parent=35 // pred_check
          %p327 = pneg %p326
        $region54: #{tpu_custom_call.1} parent=35 // pred_check_branch
          %329 = sbr.rel (%p327) target = $region56
        $region55: #{tpu_custom_call.1} parent=35 // pred_region
          %s330 = scalar_lea.vmem [#allocation2], 144
          %331 = vst [vmem:[%s330 + $0x4] sm:$0xf] 0
          %332 = vst [vmem:[%s330 + $0x8] sm:$0xf] 0
        $region56: #{tpu_custom_call.1} parent=35 // pred_fallthru
          _
        %p333 = scmp.lt.s32.totalorder %s27, 1
        // Predicated region
        $region57: #{tpu_custom_call.1} parent=35 // pred_check
          %p334 = pneg %p333
        $region58: #{tpu_custom_call.1} parent=35 // pred_check_branch
          %336 = sbr.rel (%p334) target = $region60
        $region59: #{tpu_custom_call.1} parent=35 // pred_region
          %s337 = sadd.s32 %s251, 8
          %s338 = smul.u32 %s337, 2
          %s339 = smul.addr %s338, 4
          %s340 = scalar_lea.vmem %s218, %s339 [#allocation3]
          %v341 = vld [vmem:[%s340] sm:$0xf]
          %v342 = vld [vmem:[%s340 + $0x4] sm:$0xf]
          %s343 = scalar_lea.vmem [#allocation2], 144
          %344 = vst [vmem:[%s343 + $0x4] sm:$0xf] %v341
          %345 = vst [vmem:[%s343 + $0x8] sm:$0xf] %v342
        $region60: #{tpu_custom_call.1} parent=35 // pred_fallthru
          _
        %v346 = vld [vmem:[#allocation2] sm:$0xf]
        %v347 = vld [vmem:[#allocation2 + $0x4] sm:$0xf]
        %v348 = vld [vmem:[#allocation2 + $0x8] sm:$0xf]
        %v349 = vld [vmem:[#allocation2 + $0xc] sm:$0xf]
        %v350 = vld [vmem:[#allocation2 + $0x10] sm:$0xf]
        %v351 = vld [vmem:[#allocation2 + $0x14] sm:$0xf]
        %v352 = vld [vmem:[#allocation2 + $0x18] sm:$0xf]
        %v353 = vld [vmem:[#allocation2 + $0x1c] sm:$0xf]
        %v354 = vld [vmem:[#allocation2 + $0x20] sm:$0xf]
        %v355 = vld [vmem:[#allocation2 + $0x24] sm:$0xf]
        %v356 = vld [vmem:[#allocation2 + $0x28] sm:$0xf]
        %v357 = vld [vmem:[#allocation2 + $0x2c] sm:$0xf]
        %v358 = vld [vmem:[#allocation2 + $0x30] sm:$0xf]
        %v359 = vld [vmem:[#allocation2 + $0x34] sm:$0xf]
        %v360 = vld [vmem:[#allocation2 + $0x38] sm:$0xf]
        %v361 = vld [vmem:[#allocation2 + $0x3c] sm:$0xf]
        %v362 = vld [vmem:[#allocation2 + $0x40] sm:$0xf]
        %v363 = vld [vmem:[#allocation2 + $0x44] sm:$0xf]
        %v364 = vld [vmem:[#allocation2 + $0x48] sm:$0xf]
        %v365 = vld [vmem:[#allocation2 + $0x4c] sm:$0xf]
        %v366 = vld [vmem:[#allocation2 + $0x50] sm:$0xf]
        %v367 = vld [vmem:[#allocation2 + $0x54] sm:$0xf]
        %v368 = vld [vmem:[#allocation2 + $0x58] sm:$0xf]
        %v369 = vld [vmem:[#allocation2 + $0x5c] sm:$0xf]
        %v370 = vld [vmem:[#allocation2 + $0x60] sm:$0xf]
        %v371 = vld [vmem:[#allocation2 + $0x64] sm:$0xf]
        %v372 = vld [vmem:[#allocation2 + $0x68] sm:$0xf]
        %v373 = vld [vmem:[#allocation2 + $0x6c] sm:$0xf]
        %v374 = vld [vmem:[#allocation2 + $0x70] sm:$0xf]
        %v375 = vld [vmem:[#allocation2 + $0x74] sm:$0xf]
        %v376 = vld [vmem:[#allocation2 + $0x78] sm:$0xf]
        %v377 = vld [vmem:[#allocation2 + $0x7c] sm:$0xf]
        %vm378 = vsmask.f32 256
        %vm379 = vsmask.f32 4368
        %vm380 = vmor %vm378, %vm379
        %v382 = vshrl.u32 %v346, 16
        %v384 = vrot.slane %v382, 7
        %v385 = vrot.slane %v384, 4
        %v387 = vshrl.u32 %v347, 16
        %v389 = vrot.slane %v387, 7
        %v390 = vshll.u32 %v347, 16
        %v392 = vor.u32 %v389, %v390
        %v393 = vsel %vm380, %v385, %v392
        %v394 = vrot.slane %v389, 4
        %v396 = vshrl.u32 %v348, 16
        %v398 = vrot.slane %v396, 7
        %v399 = vshll.u32 %v348, 16
        %v401 = vor.u32 %v398, %v399
        %v402 = vsel %vm380, %v394, %v401
        %v404 = vshrl.u32 %v350, 16
        %v406 = vrot.slane %v404, 7
        %v407 = vrot.slane %v406, 4
        %v409 = vshrl.u32 %v351, 16
        %v411 = vrot.slane %v409, 7
        %v412 = vshll.u32 %v351, 16
        %v414 = vor.u32 %v411, %v412
        %v415 = vsel %vm380, %v407, %v414
        %v416 = vrot.slane %v411, 4
        %v418 = vshrl.u32 %v352, 16
        %v420 = vrot.slane %v418, 7
        %v421 = vshll.u32 %v352, 16
        %v423 = vor.u32 %v420, %v421
        %v424 = vsel %vm380, %v416, %v423
        %v426 = vshrl.u32 %v354, 16
        %v428 = vrot.slane %v426, 7
        %v429 = vrot.slane %v428, 4
        %v431 = vshrl.u32 %v355, 16
        %v433 = vrot.slane %v431, 7
        %v434 = vshll.u32 %v355, 16
        %v436 = vor.u32 %v433, %v434
        %v437 = vsel %vm380, %v429, %v436
        %v438 = vrot.slane %v433, 4
        %v440 = vshrl.u32 %v356, 16
        %v442 = vrot.slane %v440, 7
        %v443 = vshll.u32 %v356, 16
        %v445 = vor.u32 %v442, %v443
        %v446 = vsel %vm380, %v438, %v445
        %v448 = vshrl.u32 %v358, 16
        %v450 = vrot.slane %v448, 7
        %v451 = vrot.slane %v450, 4
        %v453 = vshrl.u32 %v359, 16
        %v455 = vrot.slane %v453, 7
        %v456 = vshll.u32 %v359, 16
        %v458 = vor.u32 %v455, %v456
        %v459 = vsel %vm380, %v451, %v458
        %v460 = vrot.slane %v455, 4
        %v462 = vshrl.u32 %v360, 16
        %v464 = vrot.slane %v462, 7
        %v465 = vshll.u32 %v360, 16
        %v467 = vor.u32 %v464, %v465
        %v468 = vsel %vm380, %v460, %v467
        %v470 = vshrl.u32 %v362, 16
        %v472 = vrot.slane %v470, 7
        %v473 = vrot.slane %v472, 4
        %v475 = vshrl.u32 %v363, 16
        %v477 = vrot.slane %v475, 7
        %v478 = vshll.u32 %v363, 16
        %v480 = vor.u32 %v477, %v478
        %v481 = vsel %vm380, %v473, %v480
        %v482 = vrot.slane %v477, 4
        %v484 = vshrl.u32 %v364, 16
        %v486 = vrot.slane %v484, 7
        %v487 = vshll.u32 %v364, 16
        %v489 = vor.u32 %v486, %v487
        %v490 = vsel %vm380, %v482, %v489
        %v492 = vshrl.u32 %v366, 16
        %v494 = vrot.slane %v492, 7
        %v495 = vrot.slane %v494, 4
        %v497 = vshrl.u32 %v367, 16
        %v499 = vrot.slane %v497, 7
        %v500 = vshll.u32 %v367, 16
        %v502 = vor.u32 %v499, %v500
        %v503 = vsel %vm380, %v495, %v502
        %v504 = vrot.slane %v499, 4
        %v506 = vshrl.u32 %v368, 16
        %v508 = vrot.slane %v506, 7
        %v509 = vshll.u32 %v368, 16
        %v511 = vor.u32 %v508, %v509
        %v512 = vsel %vm380, %v504, %v511
        %v514 = vshrl.u32 %v370, 16
        %v516 = vrot.slane %v514, 7
        %v517 = vrot.slane %v516, 4
        %v519 = vshrl.u32 %v371, 16
        %v521 = vrot.slane %v519, 7
        %v522 = vshll.u32 %v371, 16
        %v524 = vor.u32 %v521, %v522
        %v525 = vsel %vm380, %v517, %v524
        %v526 = vrot.slane %v521, 4
        %v528 = vshrl.u32 %v372, 16
        %v530 = vrot.slane %v528, 7
        %v531 = vshll.u32 %v372, 16
        %v533 = vor.u32 %v530, %v531
        %v534 = vsel %vm380, %v526, %v533
        %v536 = vshrl.u32 %v374, 16
        %v538 = vrot.slane %v536, 7
        %v539 = vrot.slane %v538, 4
        %v541 = vshrl.u32 %v375, 16
        %v543 = vrot.slane %v541, 7
        %v544 = vshll.u32 %v375, 16
        %v546 = vor.u32 %v543, %v544
        %v547 = vsel %vm380, %v539, %v546
        %v548 = vrot.slane %v543, 4
        %v550 = vshrl.u32 %v376, 16
        %v552 = vrot.slane %v550, 7
        %v553 = vshll.u32 %v376, 16
        %v555 = vor.u32 %v552, %v553
        %v556 = vsel %vm380, %v548, %v555
        %v557 = vld [vmem:[#allocation6] sm:$0xf]
        %v558 = vld [vmem:[#allocation6 + $0x4] sm:$0xf]
        %v559 = vld [vmem:[#allocation6 + $0x8] sm:$0xf]
        %v560 = vld [vmem:[#allocation6 + $0xc] sm:$0xf]
        %v561 = vld [vmem:[#allocation6 + $0x10] sm:$0xf]
        %v562 = vld [vmem:[#allocation6 + $0x14] sm:$0xf]
        %v563 = vld [vmem:[#allocation6 + $0x18] sm:$0xf]
        %v564 = vld [vmem:[#allocation6 + $0x1c] sm:$0xf]
        %v565 = vld [vmem:[#allocation6 + $0x20] sm:$0xf]
        %v566 = vld [vmem:[#allocation6 + $0x24] sm:$0xf]
        %v567 = vld [vmem:[#allocation6 + $0x28] sm:$0xf]
        %v568 = vld [vmem:[#allocation6 + $0x2c] sm:$0xf]
        %v569 = vld [vmem:[#allocation6 + $0x30] sm:$0xf]
        %v570 = vld [vmem:[#allocation6 + $0x34] sm:$0xf]
        %v571 = vld [vmem:[#allocation6 + $0x38] sm:$0xf]
        %v572 = vld [vmem:[#allocation6 + $0x3c] sm:$0xf]
        %v573 = vld [vmem:[#allocation6 + $0x40] sm:$0xf]
        %v574 = vld [vmem:[#allocation6 + $0x44] sm:$0xf]
        %v575 = vld [vmem:[#allocation6 + $0x48] sm:$0xf]
        %v576 = vld [vmem:[#allocation6 + $0x4c] sm:$0xf]
        %v577 = vld [vmem:[#allocation6 + $0x50] sm:$0xf]
        %v578 = vld [vmem:[#allocation6 + $0x54] sm:$0xf]
        %v579 = vld [vmem:[#allocation6 + $0x58] sm:$0xf]
        %v580 = vld [vmem:[#allocation6 + $0x5c] sm:$0xf]
        %v581 = vld [vmem:[#allocation6 + $0x60] sm:$0xf]
        %v582 = vld [vmem:[#allocation6 + $0x64] sm:$0xf]
        %v583 = vld [vmem:[#allocation6 + $0x68] sm:$0xf]
        %v584 = vld [vmem:[#allocation6 + $0x6c] sm:$0xf]
        %v585 = vld [vmem:[#allocation6 + $0x70] sm:$0xf]
        %v586 = vld [vmem:[#allocation6 + $0x74] sm:$0xf]
        %v587 = vld [vmem:[#allocation6 + $0x78] sm:$0xf]
        %v588 = vld [vmem:[#allocation6 + $0x7c] sm:$0xf]
        %v605 = vunpack.c.l.b16 %v347
        %v606 = vunpack.c.l.b16 %v348
        %v607 = vunpack.c.l.b16 %v351
        %v608 = vunpack.c.l.b16 %v352
        %v609 = vunpack.c.l.b16 %v355
        %v610 = vunpack.c.l.b16 %v356
        %v611 = vunpack.c.l.b16 %v359
        %v612 = vunpack.c.l.b16 %v360
        %v613 = vunpack.c.l.b16 %v363
        %v614 = vunpack.c.l.b16 %v364
        %v615 = vunpack.c.l.b16 %v367
        %v616 = vunpack.c.l.b16 %v368
        %v617 = vunpack.c.l.b16 %v371
        %v618 = vunpack.c.l.b16 %v372
        %v619 = vunpack.c.l.b16 %v375
        %v620 = vunpack.c.l.b16 %v376
        %v621 = vpack.c.b16 %v606, %v605
        %v622 = vpack.c.b16 %v608, %v607
        %v623 = vpack.c.b16 %v610, %v609
        %v624 = vpack.c.b16 %v612, %v611
        %v625 = vpack.c.b16 %v614, %v613
        %v626 = vpack.c.b16 %v616, %v615
        %v627 = vpack.c.b16 %v618, %v617
        %v628 = vpack.c.b16 %v620, %v619
        %v653 = vunpack.c.l.b16 %v573
        %v654 = vunpack.c.l.b16 %v574
        %v655 = vunpack.c.l.b16 %v575
        %v656 = vunpack.c.l.b16 %v576
        %v657 = vunpack.c.l.b16 %v577
        %v658 = vunpack.c.l.b16 %v578
        %v659 = vunpack.c.l.b16 %v579
        %v660 = vunpack.c.l.b16 %v580
        %v661 = vunpack.c.l.b16 %v581
        %v662 = vunpack.c.l.b16 %v582
        %v663 = vunpack.c.l.b16 %v583
        %v664 = vunpack.c.l.b16 %v584
        %v665 = vunpack.c.l.b16 %v585
        %v666 = vunpack.c.l.b16 %v586
        %v667 = vunpack.c.l.b16 %v587
        %v668 = vunpack.c.l.b16 %v588
        %v669 = vpack.c.b16 %v654, %v653
        %v670 = vpack.c.b16 %v656, %v655
        %v671 = vpack.c.b16 %v658, %v657
        %v672 = vpack.c.b16 %v660, %v659
        %v673 = vpack.c.b16 %v662, %v661
        %v674 = vpack.c.b16 %v664, %v663
        %v675 = vpack.c.b16 %v666, %v665
        %v676 = vpack.c.b16 %v668, %v667
        %685 = vmatpush.bf16.msra.mxu0 %v676
        %686 = vmatpush.bf16.msra.mxu0 %v675
        %687 = vmatpush.bf16.msra.mxu0 %v674
        %688 = vmatpush.bf16.msra.mxu0 %v673
        %689 = vmatpush.bf16.msra.mxu0 %v672
        %690 = vmatpush.bf16.msra.mxu0 %v671
        %691 = vmatpush.bf16.msra.mxu0 %v670
        %692 = vmatpush.bf16.msra.mxu0 %v669
        %693 = vmatmul.bf16.gmra.mxu0 %v621
        %v694 = vpop.f32.mrf.mxu0
        %v695 = vadd.f32 0.0, %v694
        %v696 = vpop.f32.mrf.mxu0
        %v697 = vadd.f32 0.0, %v696
        %698 = vmatmul.bf16.gmra.mxu0 %v622
        %v699 = vpop.f32.mrf.mxu0
        %v700 = vadd.f32 0.0, %v699
        %v701 = vpop.f32.mrf.mxu0
        %v702 = vadd.f32 0.0, %v701
        %703 = vmatmul.bf16.gmra.mxu0 %v623
        %v704 = vpop.f32.mrf.mxu0
        %v705 = vadd.f32 0.0, %v704
        %v706 = vpop.f32.mrf.mxu0
        %v707 = vadd.f32 0.0, %v706
        %708 = vmatmul.bf16.gmra.mxu0 %v624
        %v709 = vpop.f32.mrf.mxu0
        %v710 = vadd.f32 0.0, %v709
        %v711 = vpop.f32.mrf.mxu0
        %v712 = vadd.f32 0.0, %v711
        %713 = vmatmul.bf16.gmra.mxu0 %v625
        %v714 = vpop.f32.mrf.mxu0
        %v715 = vadd.f32 0.0, %v714
        %v716 = vpop.f32.mrf.mxu0
        %v717 = vadd.f32 0.0, %v716
        %718 = vmatmul.bf16.gmra.mxu0 %v626
        %v719 = vpop.f32.mrf.mxu0
        %v720 = vadd.f32 0.0, %v719
        %v721 = vpop.f32.mrf.mxu0
        %v722 = vadd.f32 0.0, %v721
        %723 = vmatmul.bf16.gmra.mxu0 %v627
        %v724 = vpop.f32.mrf.mxu0
        %v725 = vadd.f32 0.0, %v724
        %v726 = vpop.f32.mrf.mxu0
        %v727 = vadd.f32 0.0, %v726
        %728 = vmatmul.bf16.gmra.mxu0 %v628
        %v729 = vpop.f32.mrf.mxu0
        %v730 = vadd.f32 0.0, %v729
        %v731 = vpop.f32.mrf.mxu0
        %v732 = vadd.f32 0.0, %v731
        %733 = vdwg.mxu0
        %v734 = vunpack.c.l.b16 %v393
        %v735 = vunpack.c.l.b16 %v402
        %v736 = vunpack.c.l.b16 %v415
        %v737 = vunpack.c.l.b16 %v424
        %v738 = vunpack.c.l.b16 %v437
        %v739 = vunpack.c.l.b16 %v446
        %v740 = vunpack.c.l.b16 %v459
        %v741 = vunpack.c.l.b16 %v468
        %v742 = vunpack.c.l.b16 %v481
        %v743 = vunpack.c.l.b16 %v490
        %v744 = vunpack.c.l.b16 %v503
        %v745 = vunpack.c.l.b16 %v512
        %v746 = vunpack.c.l.b16 %v525
        %v747 = vunpack.c.l.b16 %v534
        %v748 = vunpack.c.l.b16 %v547
        %v749 = vunpack.c.l.b16 %v556
        %v750 = vpack.c.b16 %v735, %v734
        %v751 = vpack.c.b16 %v737, %v736
        %v752 = vpack.c.b16 %v739, %v738
        %v753 = vpack.c.b16 %v741, %v740
        %v754 = vpack.c.b16 %v743, %v742
        %v755 = vpack.c.b16 %v745, %v744
        %v756 = vpack.c.b16 %v747, %v746
        %v757 = vpack.c.b16 %v749, %v748
        %v782 = vunpack.c.l.b16 %v557
        %v783 = vunpack.c.l.b16 %v558
        %v784 = vunpack.c.l.b16 %v559
        %v785 = vunpack.c.l.b16 %v560
        %v786 = vunpack.c.l.b16 %v561
        %v787 = vunpack.c.l.b16 %v562
        %v788 = vunpack.c.l.b16 %v563
        %v789 = vunpack.c.l.b16 %v564
        %v790 = vunpack.c.l.b16 %v565
        %v791 = vunpack.c.l.b16 %v566
        %v792 = vunpack.c.l.b16 %v567
        %v793 = vunpack.c.l.b16 %v568
        %v794 = vunpack.c.l.b16 %v569
        %v795 = vunpack.c.l.b16 %v570
        %v796 = vunpack.c.l.b16 %v571
        %v797 = vunpack.c.l.b16 %v572
        %v798 = vpack.c.b16 %v783, %v782
        %v799 = vpack.c.b16 %v785, %v784
        %v800 = vpack.c.b16 %v787, %v786
        %v801 = vpack.c.b16 %v789, %v788
        %v802 = vpack.c.b16 %v791, %v790
        %v803 = vpack.c.b16 %v793, %v792
        %v804 = vpack.c.b16 %v795, %v794
        %v805 = vpack.c.b16 %v797, %v796
        %814 = vmatpush.bf16.msra.mxu0 %v805
        %815 = vmatpush.bf16.msra.mxu0 %v804
        %816 = vmatpush.bf16.msra.mxu0 %v803
        %817 = vmatpush.bf16.msra.mxu0 %v802
        %818 = vmatpush.bf16.msra.mxu0 %v801
        %819 = vmatpush.bf16.msra.mxu0 %v800
        %820 = vmatpush.bf16.msra.mxu0 %v799
        %821 = vmatpush.bf16.msra.mxu0 %v798
        %822 = vmatmul.bf16.gmra.mxu0 %v750
        %v823 = vpop.f32.mrf.mxu0
        %v824 = vadd.f32 %v695, %v823
        %v825 = vpop.f32.mrf.mxu0
        %v826 = vadd.f32 %v697, %v825
        %827 = vmatmul.bf16.gmra.mxu0 %v751
        %v828 = vpop.f32.mrf.mxu0
        %v829 = vadd.f32 %v700, %v828
        %v830 = vpop.f32.mrf.mxu0
        %v831 = vadd.f32 %v702, %v830
        %832 = vmatmul.bf16.gmra.mxu0 %v752
        %v833 = vpop.f32.mrf.mxu0
        %v834 = vadd.f32 %v705, %v833
        %v835 = vpop.f32.mrf.mxu0
        %v836 = vadd.f32 %v707, %v835
        %837 = vmatmul.bf16.gmra.mxu0 %v753
        %v838 = vpop.f32.mrf.mxu0
        %v839 = vadd.f32 %v710, %v838
        %v840 = vpop.f32.mrf.mxu0
        %v841 = vadd.f32 %v712, %v840
        %842 = vmatmul.bf16.gmra.mxu0 %v754
        %v843 = vpop.f32.mrf.mxu0
        %v844 = vadd.f32 %v715, %v843
        %v845 = vpop.f32.mrf.mxu0
        %v846 = vadd.f32 %v717, %v845
        %847 = vmatmul.bf16.gmra.mxu0 %v755
        %v848 = vpop.f32.mrf.mxu0
        %v849 = vadd.f32 %v720, %v848
        %v850 = vpop.f32.mrf.mxu0
        %v851 = vadd.f32 %v722, %v850
        %852 = vmatmul.bf16.gmra.mxu0 %v756
        %v853 = vpop.f32.mrf.mxu0
        %v854 = vadd.f32 %v725, %v853
        %v855 = vpop.f32.mrf.mxu0
        %v856 = vadd.f32 %v727, %v855
        %857 = vmatmul.bf16.gmra.mxu0 %v757
        %v858 = vpop.f32.mrf.mxu0
        %v859 = vadd.f32 %v730, %v858
        %v860 = vpop.f32.mrf.mxu0
        %v861 = vadd.f32 %v732, %v860
        %862 = vdwg.mxu0
        %vm863 = vsmask.f32 3328
        %vm864 = vsmask.f32 7440
        %vm865 = vmor %vm863, %vm864
        %v866 = vrot.slane %v387, 4
        %v867 = vrot.slane %v390, 5
        %v868 = vor.u32 %v866, %v867
        %v869 = vrot.slane %v868, 4
        %v870 = vrot.slane %v399, 5
        %v871 = vsel %vm865, %v869, %v870
        %v872 = vrot.slane %v396, 4
        %v873 = vor.u32 %v872, %v870
        %v874 = vrot.slane %v873, 4
        %v876 = vshll.u32 %v349, 16
        %v878 = vrot.slane %v876, 5
        %v879 = vsel %vm865, %v874, %v878
        %v880 = vrot.slane %v409, 4
        %v881 = vrot.slane %v412, 5
        %v882 = vor.u32 %v880, %v881
        %v883 = vrot.slane %v882, 4
        %v884 = vrot.slane %v421, 5
        %v885 = vsel %vm865, %v883, %v884
        %v886 = vrot.slane %v418, 4
        %v887 = vor.u32 %v886, %v884
        %v888 = vrot.slane %v887, 4
        %v890 = vshll.u32 %v353, 16
        %v892 = vrot.slane %v890, 5
        %v893 = vsel %vm865, %v888, %v892
        %v894 = vrot.slane %v431, 4
        %v895 = vrot.slane %v434, 5
        %v896 = vor.u32 %v894, %v895
        %v897 = vrot.slane %v896, 4
        %v898 = vrot.slane %v443, 5
        %v899 = vsel %vm865, %v897, %v898
        %v900 = vrot.slane %v440, 4
        %v901 = vor.u32 %v900, %v898
        %v902 = vrot.slane %v901, 4
        %v904 = vshll.u32 %v357, 16
        %v906 = vrot.slane %v904, 5
        %v907 = vsel %vm865, %v902, %v906
        %v908 = vrot.slane %v453, 4
        %v909 = vrot.slane %v456, 5
        %v910 = vor.u32 %v908, %v909
        %v911 = vrot.slane %v910, 4
        %v912 = vrot.slane %v465, 5
        %v913 = vsel %vm865, %v911, %v912
        %v914 = vrot.slane %v462, 4
        %v915 = vor.u32 %v914, %v912
        %v916 = vrot.slane %v915, 4
        %v918 = vshll.u32 %v361, 16
        %v920 = vrot.slane %v918, 5
        %v921 = vsel %vm865, %v916, %v920
        %v922 = vrot.slane %v475, 4
        %v923 = vrot.slane %v478, 5
        %v924 = vor.u32 %v922, %v923
        %v925 = vrot.slane %v924, 4
        %v926 = vrot.slane %v487, 5
        %v927 = vsel %vm865, %v925, %v926
        %v928 = vrot.slane %v484, 4
        %v929 = vor.u32 %v928, %v926
        %v930 = vrot.slane %v929, 4
        %v932 = vshll.u32 %v365, 16
        %v934 = vrot.slane %v932, 5
        %v935 = vsel %vm865, %v930, %v934
        %v936 = vrot.slane %v497, 4
        %v937 = vrot.slane %v500, 5
        %v938 = vor.u32 %v936, %v937
        %v939 = vrot.slane %v938, 4
        %v940 = vrot.slane %v509, 5
        %v941 = vsel %vm865, %v939, %v940
        %v942 = vrot.slane %v506, 4
        %v943 = vor.u32 %v942, %v940
        %v944 = vrot.slane %v943, 4
        %v946 = vshll.u32 %v369, 16
        %v948 = vrot.slane %v946, 5
        %v949 = vsel %vm865, %v944, %v948
        %v950 = vrot.slane %v519, 4
        %v951 = vrot.slane %v522, 5
        %v952 = vor.u32 %v950, %v951
        %v953 = vrot.slane %v952, 4
        %v954 = vrot.slane %v531, 5
        %v955 = vsel %vm865, %v953, %v954
        %v956 = vrot.slane %v528, 4
        %v957 = vor.u32 %v956, %v954
        %v958 = vrot.slane %v957, 4
        %v960 = vshll.u32 %v373, 16
        %v962 = vrot.slane %v960, 5
        %v963 = vsel %vm865, %v958, %v962
        %v964 = vrot.slane %v541, 4
        %v965 = vrot.slane %v544, 5
        %v966 = vor.u32 %v964, %v965
        %v967 = vrot.slane %v966, 4
        %v968 = vrot.slane %v553, 5
        %v969 = vsel %vm865, %v967, %v968
        %v970 = vrot.slane %v550, 4
        %v971 = vor.u32 %v970, %v968
        %v972 = vrot.slane %v971, 4
        %v974 = vshll.u32 %v377, 16
        %v976 = vrot.slane %v974, 5
        %v977 = vsel %vm865, %v972, %v976
        %v978 = vld [vmem:[#allocation6 + $0x80] sm:$0xf]
        %v979 = vld [vmem:[#allocation6 + $0x84] sm:$0xf]
        %v980 = vld [vmem:[#allocation6 + $0x88] sm:$0xf]
        %v981 = vld [vmem:[#allocation6 + $0x8c] sm:$0xf]
        %v982 = vld [vmem:[#allocation6 + $0x90] sm:$0xf]
        %v983 = vld [vmem:[#allocation6 + $0x94] sm:$0xf]
        %v984 = vld [vmem:[#allocation6 + $0x98] sm:$0xf]
        %v985 = vld [vmem:[#allocation6 + $0x9c] sm:$0xf]
        %v986 = vld [vmem:[#allocation6 + $0xa0] sm:$0xf]
        %v987 = vld [vmem:[#allocation6 + $0xa4] sm:$0xf]
        %v988 = vld [vmem:[#allocation6 + $0xa8] sm:$0xf]
        %v989 = vld [vmem:[#allocation6 + $0xac] sm:$0xf]
        %v990 = vld [vmem:[#allocation6 + $0xb0] sm:$0xf]
        %v991 = vld [vmem:[#allocation6 + $0xb4] sm:$0xf]
        %v992 = vld [vmem:[#allocation6 + $0xb8] sm:$0xf]
        %v993 = vld [vmem:[#allocation6 + $0xbc] sm:$0xf]
        %v994 = vunpack.c.l.b16 %v871
        %v995 = vunpack.c.l.b16 %v879
        %v996 = vunpack.c.l.b16 %v885
        %v997 = vunpack.c.l.b16 %v893
        %v998 = vunpack.c.l.b16 %v899
        %v999 = vunpack.c.l.b16 %v907
        %v1000 = vunpack.c.l.b16 %v913
        %v1001 = vunpack.c.l.b16 %v921
        %v1002 = vunpack.c.l.b16 %v927
        %v1003 = vunpack.c.l.b16 %v935
        %v1004 = vunpack.c.l.b16 %v941
        %v1005 = vunpack.c.l.b16 %v949
        %v1006 = vunpack.c.l.b16 %v955
        %v1007 = vunpack.c.l.b16 %v963
        %v1008 = vunpack.c.l.b16 %v969
        %v1009 = vunpack.c.l.b16 %v977
        %v1010 = vpack.c.b16 %v995, %v994
        %v1011 = vpack.c.b16 %v997, %v996
        %v1012 = vpack.c.b16 %v999, %v998
        %v1013 = vpack.c.b16 %v1001, %v1000
        %v1014 = vpack.c.b16 %v1003, %v1002
        %v1015 = vpack.c.b16 %v1005, %v1004
        %v1016 = vpack.c.b16 %v1007, %v1006
        %v1017 = vpack.c.b16 %v1009, %v1008
        %v1042 = vunpack.c.l.b16 %v978
        %v1043 = vunpack.c.l.b16 %v979
        %v1044 = vunpack.c.l.b16 %v980
        %v1045 = vunpack.c.l.b16 %v981
        %v1046 = vunpack.c.l.b16 %v982
        %v1047 = vunpack.c.l.b16 %v983
        %v1048 = vunpack.c.l.b16 %v984
        %v1049 = vunpack.c.l.b16 %v985
        %v1050 = vunpack.c.l.b16 %v986
        %v1051 = vunpack.c.l.b16 %v987
        %v1052 = vunpack.c.l.b16 %v988
        %v1053 = vunpack.c.l.b16 %v989
        %v1054 = vunpack.c.l.b16 %v990
        %v1055 = vunpack.c.l.b16 %v991
        %v1056 = vunpack.c.l.b16 %v992
        %v1057 = vunpack.c.l.b16 %v993
        %v1058 = vpack.c.b16 %v1043, %v1042
        %v1059 = vpack.c.b16 %v1045, %v1044
        %v1060 = vpack.c.b16 %v1047, %v1046
        %v1061 = vpack.c.b16 %v1049, %v1048
        %v1062 = vpack.c.b16 %v1051, %v1050
        %v1063 = vpack.c.b16 %v1053, %v1052
        %v1064 = vpack.c.b16 %v1055, %v1054
        %v1065 = vpack.c.b16 %v1057, %v1056
        %1074 = vmatpush.bf16.msra.mxu0 %v1065
        %1075 = vmatpush.bf16.msra.mxu0 %v1064
        %1076 = vmatpush.bf16.msra.mxu0 %v1063
        %1077 = vmatpush.bf16.msra.mxu0 %v1062
        %1078 = vmatpush.bf16.msra.mxu0 %v1061
        %1079 = vmatpush.bf16.msra.mxu0 %v1060
        %1080 = vmatpush.bf16.msra.mxu0 %v1059
        %1081 = vmatpush.bf16.msra.mxu0 %v1058
        %1082 = vmatmul.bf16.gmra.mxu0 %v1010
        %v1083 = vpop.f32.mrf.mxu0
        %v1084 = vadd.f32 0.0, %v1083
        %v1085 = vpop.f32.mrf.mxu0
        %v1086 = vadd.f32 0.0, %v1085
        %1087 = vmatmul.bf16.gmra.mxu0 %v1011
        %v1088 = vpop.f32.mrf.mxu0
        %v1089 = vadd.f32 0.0, %v1088
        %v1090 = vpop.f32.mrf.mxu0
        %v1091 = vadd.f32 0.0, %v1090
        %1092 = vmatmul.bf16.gmra.mxu0 %v1012
        %v1093 = vpop.f32.mrf.mxu0
        %v1094 = vadd.f32 0.0, %v1093
        %v1095 = vpop.f32.mrf.mxu0
        %v1096 = vadd.f32 0.0, %v1095
        %1097 = vmatmul.bf16.gmra.mxu0 %v1013
        %v1098 = vpop.f32.mrf.mxu0
        %v1099 = vadd.f32 0.0, %v1098
        %v1100 = vpop.f32.mrf.mxu0
        %v1101 = vadd.f32 0.0, %v1100
        %1102 = vmatmul.bf16.gmra.mxu0 %v1014
        %v1103 = vpop.f32.mrf.mxu0
        %v1104 = vadd.f32 0.0, %v1103
        %v1105 = vpop.f32.mrf.mxu0
        %v1106 = vadd.f32 0.0, %v1105
        %1107 = vmatmul.bf16.gmra.mxu0 %v1015
        %v1108 = vpop.f32.mrf.mxu0
        %v1109 = vadd.f32 0.0, %v1108
        %v1110 = vpop.f32.mrf.mxu0
        %v1111 = vadd.f32 0.0, %v1110
        %1112 = vmatmul.bf16.gmra.mxu0 %v1016
        %v1113 = vpop.f32.mrf.mxu0
        %v1114 = vadd.f32 0.0, %v1113
        %v1115 = vpop.f32.mrf.mxu0
        %v1116 = vadd.f32 0.0, %v1115
        %1117 = vmatmul.bf16.gmra.mxu0 %v1017
        %v1118 = vpop.f32.mrf.mxu0
        %v1119 = vadd.f32 0.0, %v1118
        %v1120 = vpop.f32.mrf.mxu0
        %v1121 = vadd.f32 0.0, %v1120
        %1122 = vdwg.mxu0
        %v1123 = vadd.f32 %v824, %v1084
        %v1124 = vadd.f32 %v826, %v1086
        %v1125 = vadd.f32 %v829, %v1089
        %v1126 = vadd.f32 %v831, %v1091
        %v1127 = vadd.f32 %v834, %v1094
        %v1128 = vadd.f32 %v836, %v1096
        %v1129 = vadd.f32 %v839, %v1099
        %v1130 = vadd.f32 %v841, %v1101
        %v1131 = vadd.f32 %v844, %v1104
        %v1132 = vadd.f32 %v846, %v1106
        %v1133 = vadd.f32 %v849, %v1109
        %v1134 = vadd.f32 %v851, %v1111
        %v1135 = vadd.f32 %v854, %v1114
        %v1136 = vadd.f32 %v856, %v1116
        %v1137 = vadd.f32 %v859, %v1119
        %v1138 = vadd.f32 %v861, %v1121
        %v1139 = vld [vmem:[%s291] sm:$0xf]
        %v1140 = vld [vmem:[%s291 + $0x4] sm:$0xf]
        %v1141 = vld [vmem:[%s291 + $0x8] sm:$0xf]
        %v1142 = vld [vmem:[%s291 + $0xc] sm:$0xf]
        %v1143 = vld [vmem:[%s291 + $0x10] sm:$0xf]
        %v1144 = vld [vmem:[%s291 + $0x14] sm:$0xf]
        %v1145 = vld [vmem:[%s291 + $0x18] sm:$0xf]
        %v1146 = vld [vmem:[%s291 + $0x1c] sm:$0xf]
        %v1147 = vld [vmem:[%s291 + $0x20] sm:$0xf]
        %v1148 = vld [vmem:[%s291 + $0x24] sm:$0xf]
        %v1149 = vld [vmem:[%s291 + $0x28] sm:$0xf]
        %v1150 = vld [vmem:[%s291 + $0x2c] sm:$0xf]
        %v1151 = vld [vmem:[%s291 + $0x30] sm:$0xf]
        %v1152 = vld [vmem:[%s291 + $0x34] sm:$0xf]
        %v1153 = vld [vmem:[%s291 + $0x38] sm:$0xf]
        %v1154 = vld [vmem:[%s291 + $0x3c] sm:$0xf]
        %v1155 = vld [vmem:[%s291 + $0x40] sm:$0xf]
        %v1156 = vld [vmem:[%s291 + $0x44] sm:$0xf]
        %v1157 = vld [vmem:[%s291 + $0x48] sm:$0xf]
        %v1158 = vld [vmem:[%s291 + $0x4c] sm:$0xf]
        %v1159 = vld [vmem:[%s291 + $0x50] sm:$0xf]
        %v1160 = vld [vmem:[%s291 + $0x54] sm:$0xf]
        %v1161 = vld [vmem:[%s291 + $0x58] sm:$0xf]
        %v1162 = vld [vmem:[%s291 + $0x5c] sm:$0xf]
        %v1163 = vld [vmem:[%s291 + $0x60] sm:$0xf]
        %v1164 = vld [vmem:[%s291 + $0x64] sm:$0xf]
        %v1165 = vld [vmem:[%s291 + $0x68] sm:$0xf]
        %v1166 = vld [vmem:[%s291 + $0x6c] sm:$0xf]
        %v1167 = vld [vmem:[%s291 + $0x70] sm:$0xf]
        %v1168 = vld [vmem:[%s291 + $0x74] sm:$0xf]
        %v1169 = vld [vmem:[%s291 + $0x78] sm:$0xf]
        %v1170 = vld [vmem:[%s291 + $0x7c] sm:$0xf]
        %v1172 = vshrl.u32 %v1139, 16
        %v1174 = vrot.slane %v1172, 7
        %v1175 = vrot.slane %v1174, 4
        %v1177 = vshrl.u32 %v1140, 16
        %v1179 = vrot.slane %v1177, 7
        %v1180 = vshll.u32 %v1140, 16
        %v1182 = vor.u32 %v1179, %v1180
        %v1183 = vsel %vm380, %v1175, %v1182
        %v1184 = vrot.slane %v1179, 4
        %v1186 = vshrl.u32 %v1141, 16
        %v1188 = vrot.slane %v1186, 7
        %v1189 = vshll.u32 %v1141, 16
        %v1191 = vor.u32 %v1188, %v1189
        %v1192 = vsel %vm380, %v1184, %v1191
        %v1194 = vshrl.u32 %v1143, 16
        %v1196 = vrot.slane %v1194, 7
        %v1197 = vrot.slane %v1196, 4
        %v1199 = vshrl.u32 %v1144, 16
        %v1201 = vrot.slane %v1199, 7
        %v1202 = vshll.u32 %v1144, 16
        %v1204 = vor.u32 %v1201, %v1202
        %v1205 = vsel %vm380, %v1197, %v1204
        %v1206 = vrot.slane %v1201, 4
        %v1208 = vshrl.u32 %v1145, 16
        %v1210 = vrot.slane %v1208, 7
        %v1211 = vshll.u32 %v1145, 16
        %v1213 = vor.u32 %v1210, %v1211
        %v1214 = vsel %vm380, %v1206, %v1213
        %v1216 = vshrl.u32 %v1147, 16
        %v1218 = vrot.slane %v1216, 7
        %v1219 = vrot.slane %v1218, 4
        %v1221 = vshrl.u32 %v1148, 16
        %v1223 = vrot.slane %v1221, 7
        %v1224 = vshll.u32 %v1148, 16
        %v1226 = vor.u32 %v1223, %v1224
        %v1227 = vsel %vm380, %v1219, %v1226
        %v1228 = vrot.slane %v1223, 4
        %v1230 = vshrl.u32 %v1149, 16
        %v1232 = vrot.slane %v1230, 7
        %v1233 = vshll.u32 %v1149, 16
        %v1235 = vor.u32 %v1232, %v1233
        %v1236 = vsel %vm380, %v1228, %v1235
        %v1238 = vshrl.u32 %v1151, 16
        %v1240 = vrot.slane %v1238, 7
        %v1241 = vrot.slane %v1240, 4
        %v1243 = vshrl.u32 %v1152, 16
        %v1245 = vrot.slane %v1243, 7
        %v1246 = vshll.u32 %v1152, 16
        %v1248 = vor.u32 %v1245, %v1246
        %v1249 = vsel %vm380, %v1241, %v1248
        %v1250 = vrot.slane %v1245, 4
        %v1252 = vshrl.u32 %v1153, 16
        %v1254 = vrot.slane %v1252, 7
        %v1255 = vshll.u32 %v1153, 16
        %v1257 = vor.u32 %v1254, %v1255
        %v1258 = vsel %vm380, %v1250, %v1257
        %v1260 = vshrl.u32 %v1155, 16
        %v1262 = vrot.slane %v1260, 7
        %v1263 = vrot.slane %v1262, 4
        %v1265 = vshrl.u32 %v1156, 16
        %v1267 = vrot.slane %v1265, 7
        %v1268 = vshll.u32 %v1156, 16
        %v1270 = vor.u32 %v1267, %v1268
        %v1271 = vsel %vm380, %v1263, %v1270
        %v1272 = vrot.slane %v1267, 4
        %v1274 = vshrl.u32 %v1157, 16
        %v1276 = vrot.slane %v1274, 7
        %v1277 = vshll.u32 %v1157, 16
        %v1279 = vor.u32 %v1276, %v1277
        %v1280 = vsel %vm380, %v1272, %v1279
        %v1282 = vshrl.u32 %v1159, 16
        %v1284 = vrot.slane %v1282, 7
        %v1285 = vrot.slane %v1284, 4
        %v1287 = vshrl.u32 %v1160, 16
        %v1289 = vrot.slane %v1287, 7
        %v1290 = vshll.u32 %v1160, 16
        %v1292 = vor.u32 %v1289, %v1290
        %v1293 = vsel %vm380, %v1285, %v1292
        %v1294 = vrot.slane %v1289, 4
        %v1296 = vshrl.u32 %v1161, 16
        %v1298 = vrot.slane %v1296, 7
        %v1299 = vshll.u32 %v1161, 16
        %v1301 = vor.u32 %v1298, %v1299
        %v1302 = vsel %vm380, %v1294, %v1301
        %v1304 = vshrl.u32 %v1163, 16
        %v1306 = vrot.slane %v1304, 7
        %v1307 = vrot.slane %v1306, 4
        %v1309 = vshrl.u32 %v1164, 16
        %v1311 = vrot.slane %v1309, 7
        %v1312 = vshll.u32 %v1164, 16
        %v1314 = vor.u32 %v1311, %v1312
        %v1315 = vsel %vm380, %v1307, %v1314
        %v1316 = vrot.slane %v1311, 4
        %v1318 = vshrl.u32 %v1165, 16
        %v1320 = vrot.slane %v1318, 7
        %v1321 = vshll.u32 %v1165, 16
        %v1323 = vor.u32 %v1320, %v1321
        %v1324 = vsel %vm380, %v1316, %v1323
        %v1326 = vshrl.u32 %v1167, 16
        %v1328 = vrot.slane %v1326, 7
        %v1329 = vrot.slane %v1328, 4
        %v1331 = vshrl.u32 %v1168, 16
        %v1333 = vrot.slane %v1331, 7
        %v1334 = vshll.u32 %v1168, 16
        %v1336 = vor.u32 %v1333, %v1334
        %v1337 = vsel %vm380, %v1329, %v1336
        %v1338 = vrot.slane %v1333, 4
        %v1340 = vshrl.u32 %v1169, 16
        %v1342 = vrot.slane %v1340, 7
        %v1343 = vshll.u32 %v1169, 16
        %v1345 = vor.u32 %v1342, %v1343
        %v1346 = vsel %vm380, %v1338, %v1345
        %v1347 = vld [vmem:[#allocation6 + $0xc0] sm:$0xf]
        %v1348 = vld [vmem:[#allocation6 + $0xc4] sm:$0xf]
        %v1349 = vld [vmem:[#allocation6 + $0xc8] sm:$0xf]
        %v1350 = vld [vmem:[#allocation6 + $0xcc] sm:$0xf]
        %v1351 = vld [vmem:[#allocation6 + $0xd0] sm:$0xf]
        %v1352 = vld [vmem:[#allocation6 + $0xd4] sm:$0xf]
        %v1353 = vld [vmem:[#allocation6 + $0xd8] sm:$0xf]
        %v1354 = vld [vmem:[#allocation6 + $0xdc] sm:$0xf]
        %v1355 = vld [vmem:[#allocation6 + $0xe0] sm:$0xf]
        %v1356 = vld [vmem:[#allocation6 + $0xe4] sm:$0xf]
        %v1357 = vld [vmem:[#allocation6 + $0xe8] sm:$0xf]
        %v1358 = vld [vmem:[#allocation6 + $0xec] sm:$0xf]
        %v1359 = vld [vmem:[#allocation6 + $0xf0] sm:$0xf]
        %v1360 = vld [vmem:[#allocation6 + $0xf4] sm:$0xf]
        %v1361 = vld [vmem:[#allocation6 + $0xf8] sm:$0xf]
        %v1362 = vld [vmem:[#allocation6 + $0xfc] sm:$0xf]
        %v1363 = vunpack.c.l.b16 %v1183
        %v1364 = vunpack.c.l.b16 %v1192
        %v1365 = vunpack.c.l.b16 %v1205
        %v1366 = vunpack.c.l.b16 %v1214
        %v1367 = vunpack.c.l.b16 %v1227
        %v1368 = vunpack.c.l.b16 %v1236
        %v1369 = vunpack.c.l.b16 %v1249
        %v1370 = vunpack.c.l.b16 %v1258
        %v1371 = vunpack.c.l.b16 %v1271
        %v1372 = vunpack.c.l.b16 %v1280
        %v1373 = vunpack.c.l.b16 %v1293
        %v1374 = vunpack.c.l.b16 %v1302
        %v1375 = vunpack.c.l.b16 %v1315
        %v1376 = vunpack.c.l.b16 %v1324
        %v1377 = vunpack.c.l.b16 %v1337
        %v1378 = vunpack.c.l.b16 %v1346
        %v1379 = vpack.c.b16 %v1364, %v1363
        %v1380 = vpack.c.b16 %v1366, %v1365
        %v1381 = vpack.c.b16 %v1368, %v1367
        %v1382 = vpack.c.b16 %v1370, %v1369
        %v1383 = vpack.c.b16 %v1372, %v1371
        %v1384 = vpack.c.b16 %v1374, %v1373
        %v1385 = vpack.c.b16 %v1376, %v1375
        %v1386 = vpack.c.b16 %v1378, %v1377
        %v1411 = vunpack.c.l.b16 %v1347
        %v1412 = vunpack.c.l.b16 %v1348
        %v1413 = vunpack.c.l.b16 %v1349
        %v1414 = vunpack.c.l.b16 %v1350
        %v1415 = vunpack.c.l.b16 %v1351
        %v1416 = vunpack.c.l.b16 %v1352
        %v1417 = vunpack.c.l.b16 %v1353
        %v1418 = vunpack.c.l.b16 %v1354
        %v1419 = vunpack.c.l.b16 %v1355
        %v1420 = vunpack.c.l.b16 %v1356
        %v1421 = vunpack.c.l.b16 %v1357
        %v1422 = vunpack.c.l.b16 %v1358
        %v1423 = vunpack.c.l.b16 %v1359
        %v1424 = vunpack.c.l.b16 %v1360
        %v1425 = vunpack.c.l.b16 %v1361
        %v1426 = vunpack.c.l.b16 %v1362
        %v1427 = vpack.c.b16 %v1412, %v1411
        %v1428 = vpack.c.b16 %v1414, %v1413
        %v1429 = vpack.c.b16 %v1416, %v1415
        %v1430 = vpack.c.b16 %v1418, %v1417
        %v1431 = vpack.c.b16 %v1420, %v1419
        %v1432 = vpack.c.b16 %v1422, %v1421
        %v1433 = vpack.c.b16 %v1424, %v1423
        %v1434 = vpack.c.b16 %v1426, %v1425
        %1443 = vmatpush.bf16.msra.mxu0 %v1434
        %1444 = vmatpush.bf16.msra.mxu0 %v1433
        %1445 = vmatpush.bf16.msra.mxu0 %v1432
        %1446 = vmatpush.bf16.msra.mxu0 %v1431
        %1447 = vmatpush.bf16.msra.mxu0 %v1430
        %1448 = vmatpush.bf16.msra.mxu0 %v1429
        %1449 = vmatpush.bf16.msra.mxu0 %v1428
        %1450 = vmatpush.bf16.msra.mxu0 %v1427
        %1451 = vmatmul.bf16.gmra.mxu0 %v1379
        %v1452 = vpop.f32.mrf.mxu0
        %v1453 = vadd.f32 0.0, %v1452
        %v1454 = vpop.f32.mrf.mxu0
        %v1455 = vadd.f32 0.0, %v1454
        %1456 = vmatmul.bf16.gmra.mxu0 %v1380
        %v1457 = vpop.f32.mrf.mxu0
        %v1458 = vadd.f32 0.0, %v1457
        %v1459 = vpop.f32.mrf.mxu0
        %v1460 = vadd.f32 0.0, %v1459
        %1461 = vmatmul.bf16.gmra.mxu0 %v1381
        %v1462 = vpop.f32.mrf.mxu0
        %v1463 = vadd.f32 0.0, %v1462
        %v1464 = vpop.f32.mrf.mxu0
        %v1465 = vadd.f32 0.0, %v1464
        %1466 = vmatmul.bf16.gmra.mxu0 %v1382
        %v1467 = vpop.f32.mrf.mxu0
        %v1468 = vadd.f32 0.0, %v1467
        %v1469 = vpop.f32.mrf.mxu0
        %v1470 = vadd.f32 0.0, %v1469
        %1471 = vmatmul.bf16.gmra.mxu0 %v1383
        %v1472 = vpop.f32.mrf.mxu0
        %v1473 = vadd.f32 0.0, %v1472
        %v1474 = vpop.f32.mrf.mxu0
        %v1475 = vadd.f32 0.0, %v1474
        %1476 = vmatmul.bf16.gmra.mxu0 %v1384
        %v1477 = vpop.f32.mrf.mxu0
        %v1478 = vadd.f32 0.0, %v1477
        %v1479 = vpop.f32.mrf.mxu0
        %v1480 = vadd.f32 0.0, %v1479
        %1481 = vmatmul.bf16.gmra.mxu0 %v1385
        %v1482 = vpop.f32.mrf.mxu0
        %v1483 = vadd.f32 0.0, %v1482
        %v1484 = vpop.f32.mrf.mxu0
        %v1485 = vadd.f32 0.0, %v1484
        %1486 = vmatmul.bf16.gmra.mxu0 %v1386
        %v1487 = vpop.f32.mrf.mxu0
        %v1488 = vadd.f32 0.0, %v1487
        %v1489 = vpop.f32.mrf.mxu0
        %v1490 = vadd.f32 0.0, %v1489
        %1491 = vdwg.mxu0
        %v1492 = vadd.f32 %v1123, %v1453
        %v1493 = vadd.f32 %v1124, %v1455
        %v1494 = vadd.f32 %v1125, %v1458
        %v1495 = vadd.f32 %v1126, %v1460
        %v1496 = vadd.f32 %v1127, %v1463
        %v1497 = vadd.f32 %v1128, %v1465
        %v1498 = vadd.f32 %v1129, %v1468
        %v1499 = vadd.f32 %v1130, %v1470
        %v1500 = vadd.f32 %v1131, %v1473
        %v1501 = vadd.f32 %v1132, %v1475
        %v1502 = vadd.f32 %v1133, %v1478
        %v1503 = vadd.f32 %v1134, %v1480
        %v1504 = vadd.f32 %v1135, %v1483
        %v1505 = vadd.f32 %v1136, %v1485
        %v1506 = vadd.f32 %v1137, %v1488
        %v1507 = vadd.f32 %v1138, %v1490
        %v1508 = vld [vmem:[#allocation6 + $0x100] sm:$0xf]
        %v1509 = vld [vmem:[#allocation6 + $0x104] sm:$0xf]
        %v1510 = vld [vmem:[#allocation6 + $0x108] sm:$0xf]
        %v1511 = vld [vmem:[#allocation6 + $0x10c] sm:$0xf]
        %v1512 = vld [vmem:[#allocation6 + $0x110] sm:$0xf]
        %v1513 = vld [vmem:[#allocation6 + $0x114] sm:$0xf]
        %v1514 = vld [vmem:[#allocation6 + $0x118] sm:$0xf]
        %v1515 = vld [vmem:[#allocation6 + $0x11c] sm:$0xf]
        %v1516 = vld [vmem:[#allocation6 + $0x120] sm:$0xf]
        %v1517 = vld [vmem:[#allocation6 + $0x124] sm:$0xf]
        %v1518 = vld [vmem:[#allocation6 + $0x128] sm:$0xf]
        %v1519 = vld [vmem:[#allocation6 + $0x12c] sm:$0xf]
        %v1520 = vld [vmem:[#allocation6 + $0x130] sm:$0xf]
        %v1521 = vld [vmem:[#allocation6 + $0x134] sm:$0xf]
        %v1522 = vld [vmem:[#allocation6 + $0x138] sm:$0xf]
        %v1523 = vld [vmem:[#allocation6 + $0x13c] sm:$0xf]
        %v1540 = vunpack.c.l.b16 %v1140
        %v1541 = vunpack.c.l.b16 %v1141
        %v1542 = vunpack.c.l.b16 %v1144
        %v1543 = vunpack.c.l.b16 %v1145
        %v1544 = vunpack.c.l.b16 %v1148
        %v1545 = vunpack.c.l.b16 %v1149
        %v1546 = vunpack.c.l.b16 %v1152
        %v1547 = vunpack.c.l.b16 %v1153
        %v1548 = vunpack.c.l.b16 %v1156
        %v1549 = vunpack.c.l.b16 %v1157
        %v1550 = vunpack.c.l.b16 %v1160
        %v1551 = vunpack.c.l.b16 %v1161
        %v1552 = vunpack.c.l.b16 %v1164
        %v1553 = vunpack.c.l.b16 %v1165
        %v1554 = vunpack.c.l.b16 %v1168
        %v1555 = vunpack.c.l.b16 %v1169
        %v1556 = vpack.c.b16 %v1541, %v1540
        %v1557 = vpack.c.b16 %v1543, %v1542
        %v1558 = vpack.c.b16 %v1545, %v1544
        %v1559 = vpack.c.b16 %v1547, %v1546
        %v1560 = vpack.c.b16 %v1549, %v1548
        %v1561 = vpack.c.b16 %v1551, %v1550
        %v1562 = vpack.c.b16 %v1553, %v1552
        %v1563 = vpack.c.b16 %v1555, %v1554
        %v1588 = vunpack.c.l.b16 %v1508
        %v1589 = vunpack.c.l.b16 %v1509
        %v1590 = vunpack.c.l.b16 %v1510
        %v1591 = vunpack.c.l.b16 %v1511
        %v1592 = vunpack.c.l.b16 %v1512
        %v1593 = vunpack.c.l.b16 %v1513
        %v1594 = vunpack.c.l.b16 %v1514
        %v1595 = vunpack.c.l.b16 %v1515
        %v1596 = vunpack.c.l.b16 %v1516
        %v1597 = vunpack.c.l.b16 %v1517
        %v1598 = vunpack.c.l.b16 %v1518
        %v1599 = vunpack.c.l.b16 %v1519
        %v1600 = vunpack.c.l.b16 %v1520
        %v1601 = vunpack.c.l.b16 %v1521
        %v1602 = vunpack.c.l.b16 %v1522
        %v1603 = vunpack.c.l.b16 %v1523
        %v1604 = vpack.c.b16 %v1589, %v1588
        %v1605 = vpack.c.b16 %v1591, %v1590
        %v1606 = vpack.c.b16 %v1593, %v1592
        %v1607 = vpack.c.b16 %v1595, %v1594
        %v1608 = vpack.c.b16 %v1597, %v1596
        %v1609 = vpack.c.b16 %v1599, %v1598
        %v1610 = vpack.c.b16 %v1601, %v1600
        %v1611 = vpack.c.b16 %v1603, %v1602
        %1620 = vmatpush.bf16.msra.mxu0 %v1611
        %1621 = vmatpush.bf16.msra.mxu0 %v1610
        %1622 = vmatpush.bf16.msra.mxu0 %v1609
        %1623 = vmatpush.bf16.msra.mxu0 %v1608
        %1624 = vmatpush.bf16.msra.mxu0 %v1607
        %1625 = vmatpush.bf16.msra.mxu0 %v1606
        %1626 = vmatpush.bf16.msra.mxu0 %v1605
        %1627 = vmatpush.bf16.msra.mxu0 %v1604
        %1628 = vmatmul.bf16.gmra.mxu0 %v1556
        %v1629 = vpop.f32.mrf.mxu0
        %v1630 = vadd.f32 0.0, %v1629
        %v1631 = vpop.f32.mrf.mxu0
        %v1632 = vadd.f32 0.0, %v1631
        %1633 = vmatmul.bf16.gmra.mxu0 %v1557
        %v1634 = vpop.f32.mrf.mxu0
        %v1635 = vadd.f32 0.0, %v1634
        %v1636 = vpop.f32.mrf.mxu0
        %v1637 = vadd.f32 0.0, %v1636
        %1638 = vmatmul.bf16.gmra.mxu0 %v1558
        %v1639 = vpop.f32.mrf.mxu0
        %v1640 = vadd.f32 0.0, %v1639
        %v1641 = vpop.f32.mrf.mxu0
        %v1642 = vadd.f32 0.0, %v1641
        %1643 = vmatmul.bf16.gmra.mxu0 %v1559
        %v1644 = vpop.f32.mrf.mxu0
        %v1645 = vadd.f32 0.0, %v1644
        %v1646 = vpop.f32.mrf.mxu0
        %v1647 = vadd.f32 0.0, %v1646
        %1648 = vmatmul.bf16.gmra.mxu0 %v1560
        %v1649 = vpop.f32.mrf.mxu0
        %v1650 = vadd.f32 0.0, %v1649
        %v1651 = vpop.f32.mrf.mxu0
        %v1652 = vadd.f32 0.0, %v1651
        %1653 = vmatmul.bf16.gmra.mxu0 %v1561
        %v1654 = vpop.f32.mrf.mxu0
        %v1655 = vadd.f32 0.0, %v1654
        %v1656 = vpop.f32.mrf.mxu0
        %v1657 = vadd.f32 0.0, %v1656
        %1658 = vmatmul.bf16.gmra.mxu0 %v1562
        %v1659 = vpop.f32.mrf.mxu0
        %v1660 = vadd.f32 0.0, %v1659
        %v1661 = vpop.f32.mrf.mxu0
        %v1662 = vadd.f32 0.0, %v1661
        %1663 = vmatmul.bf16.gmra.mxu0 %v1563
        %v1664 = vpop.f32.mrf.mxu0
        %v1665 = vadd.f32 0.0, %v1664
        %v1666 = vpop.f32.mrf.mxu0
        %v1667 = vadd.f32 0.0, %v1666
        %1668 = vdwg.mxu0
        %v1669 = vadd.f32 %v1492, %v1630
        %v1670 = vadd.f32 %v1493, %v1632
        %v1671 = vadd.f32 %v1494, %v1635
        %v1672 = vadd.f32 %v1495, %v1637
        %v1673 = vadd.f32 %v1496, %v1640
        %v1674 = vadd.f32 %v1497, %v1642
        %v1675 = vadd.f32 %v1498, %v1645
        %v1676 = vadd.f32 %v1499, %v1647
        %v1677 = vadd.f32 %v1500, %v1650
        %v1678 = vadd.f32 %v1501, %v1652
        %v1679 = vadd.f32 %v1502, %v1655
        %v1680 = vadd.f32 %v1503, %v1657
        %v1681 = vadd.f32 %v1504, %v1660
        %v1682 = vadd.f32 %v1505, %v1662
        %v1683 = vadd.f32 %v1506, %v1665
        %v1684 = vadd.f32 %v1507, %v1667
        %v1685 = vrot.slane %v1177, 4
        %v1686 = vrot.slane %v1180, 5
        %v1687 = vor.u32 %v1685, %v1686
        %v1688 = vrot.slane %v1687, 4
        %v1689 = vrot.slane %v1189, 5
        %v1690 = vsel %vm865, %v1688, %v1689
        %v1691 = vrot.slane %v1186, 4
        %v1692 = vor.u32 %v1691, %v1689
        %v1693 = vrot.slane %v1692, 4
        %v1695 = vshll.u32 %v1142, 16
        %v1697 = vrot.slane %v1695, 5
        %v1698 = vsel %vm865, %v1693, %v1697
        %v1699 = vrot.slane %v1199, 4
        %v1700 = vrot.slane %v1202, 5
        %v1701 = vor.u32 %v1699, %v1700
        %v1702 = vrot.slane %v1701, 4
        %v1703 = vrot.slane %v1211, 5
        %v1704 = vsel %vm865, %v1702, %v1703
        %v1705 = vrot.slane %v1208, 4
        %v1706 = vor.u32 %v1705, %v1703
        %v1707 = vrot.slane %v1706, 4
        %v1709 = vshll.u32 %v1146, 16
        %v1711 = vrot.slane %v1709, 5
        %v1712 = vsel %vm865, %v1707, %v1711
        %v1713 = vrot.slane %v1221, 4
        %v1714 = vrot.slane %v1224, 5
        %v1715 = vor.u32 %v1713, %v1714
        %v1716 = vrot.slane %v1715, 4
        %v1717 = vrot.slane %v1233, 5
        %v1718 = vsel %vm865, %v1716, %v1717
        %v1719 = vrot.slane %v1230, 4
        %v1720 = vor.u32 %v1719, %v1717
        %v1721 = vrot.slane %v1720, 4
        %v1723 = vshll.u32 %v1150, 16
        %v1725 = vrot.slane %v1723, 5
        %v1726 = vsel %vm865, %v1721, %v1725
        %v1727 = vrot.slane %v1243, 4
        %v1728 = vrot.slane %v1246, 5
        %v1729 = vor.u32 %v1727, %v1728
        %v1730 = vrot.slane %v1729, 4
        %v1731 = vrot.slane %v1255, 5
        %v1732 = vsel %vm865, %v1730, %v1731
        %v1733 = vrot.slane %v1252, 4
        %v1734 = vor.u32 %v1733, %v1731
        %v1735 = vrot.slane %v1734, 4
        %v1737 = vshll.u32 %v1154, 16
        %v1739 = vrot.slane %v1737, 5
        %v1740 = vsel %vm865, %v1735, %v1739
        %v1741 = vrot.slane %v1265, 4
        %v1742 = vrot.slane %v1268, 5
        %v1743 = vor.u32 %v1741, %v1742
        %v1744 = vrot.slane %v1743, 4
        %v1745 = vrot.slane %v1277, 5
        %v1746 = vsel %vm865, %v1744, %v1745
        %v1747 = vrot.slane %v1274, 4
        %v1748 = vor.u32 %v1747, %v1745
        %v1749 = vrot.slane %v1748, 4
        %v1751 = vshll.u32 %v1158, 16
        %v1753 = vrot.slane %v1751, 5
        %v1754 = vsel %vm865, %v1749, %v1753
        %v1755 = vrot.slane %v1287, 4
        %v1756 = vrot.slane %v1290, 5
        %v1757 = vor.u32 %v1755, %v1756
        %v1758 = vrot.slane %v1757, 4
        %v1759 = vrot.slane %v1299, 5
        %v1760 = vsel %vm865, %v1758, %v1759
        %v1761 = vrot.slane %v1296, 4
        %v1762 = vor.u32 %v1761, %v1759
        %v1763 = vrot.slane %v1762, 4
        %v1765 = vshll.u32 %v1162, 16
        %v1767 = vrot.slane %v1765, 5
        %v1768 = vsel %vm865, %v1763, %v1767
        %v1769 = vrot.slane %v1309, 4
        %v1770 = vrot.slane %v1312, 5
        %v1771 = vor.u32 %v1769, %v1770
        %v1772 = vrot.slane %v1771, 4
        %v1773 = vrot.slane %v1321, 5
        %v1774 = vsel %vm865, %v1772, %v1773
        %v1775 = vrot.slane %v1318, 4
        %v1776 = vor.u32 %v1775, %v1773
        %v1777 = vrot.slane %v1776, 4
        %v1779 = vshll.u32 %v1166, 16
        %v1781 = vrot.slane %v1779, 5
        %v1782 = vsel %vm865, %v1777, %v1781
        %v1783 = vrot.slane %v1331, 4
        %v1784 = vrot.slane %v1334, 5
        %v1785 = vor.u32 %v1783, %v1784
        %v1786 = vrot.slane %v1785, 4
        %v1787 = vrot.slane %v1343, 5
        %v1788 = vsel %vm865, %v1786, %v1787
        %v1789 = vrot.slane %v1340, 4
        %v1790 = vor.u32 %v1789, %v1787
        %v1791 = vrot.slane %v1790, 4
        %v1793 = vshll.u32 %v1170, 16
        %v1795 = vrot.slane %v1793, 5
        %v1796 = vsel %vm865, %v1791, %v1795
        %v1797 = vld [vmem:[#allocation6 + $0x140] sm:$0xf]
        %v1798 = vld [vmem:[#allocation6 + $0x144] sm:$0xf]
        %v1799 = vld [vmem:[#allocation6 + $0x148] sm:$0xf]
        %v1800 = vld [vmem:[#allocation6 + $0x14c] sm:$0xf]
        %v1801 = vld [vmem:[#allocation6 + $0x150] sm:$0xf]
        %v1802 = vld [vmem:[#allocation6 + $0x154] sm:$0xf]
        %v1803 = vld [vmem:[#allocation6 + $0x158] sm:$0xf]
        %v1804 = vld [vmem:[#allocation6 + $0x15c] sm:$0xf]
        %v1805 = vld [vmem:[#allocation6 + $0x160] sm:$0xf]
        %v1806 = vld [vmem:[#allocation6 + $0x164] sm:$0xf]
        %v1807 = vld [vmem:[#allocation6 + $0x168] sm:$0xf]
        %v1808 = vld [vmem:[#allocation6 + $0x16c] sm:$0xf]
        %v1809 = vld [vmem:[#allocation6 + $0x170] sm:$0xf]
        %v1810 = vld [vmem:[#allocation6 + $0x174] sm:$0xf]
        %v1811 = vld [vmem:[#allocation6 + $0x178] sm:$0xf]
        %v1812 = vld [vmem:[#allocation6 + $0x17c] sm:$0xf]
        %v1813 = vunpack.c.l.b16 %v1690
        %v1814 = vunpack.c.l.b16 %v1698
        %v1815 = vunpack.c.l.b16 %v1704
        %v1816 = vunpack.c.l.b16 %v1712
        %v1817 = vunpack.c.l.b16 %v1718
        %v1818 = vunpack.c.l.b16 %v1726
        %v1819 = vunpack.c.l.b16 %v1732
        %v1820 = vunpack.c.l.b16 %v1740
        %v1821 = vunpack.c.l.b16 %v1746
        %v1822 = vunpack.c.l.b16 %v1754
        %v1823 = vunpack.c.l.b16 %v1760
        %v1824 = vunpack.c.l.b16 %v1768
        %v1825 = vunpack.c.l.b16 %v1774
        %v1826 = vunpack.c.l.b16 %v1782
        %v1827 = vunpack.c.l.b16 %v1788
        %v1828 = vunpack.c.l.b16 %v1796
        %v1829 = vpack.c.b16 %v1814, %v1813
        %v1830 = vpack.c.b16 %v1816, %v1815
        %v1831 = vpack.c.b16 %v1818, %v1817
        %v1832 = vpack.c.b16 %v1820, %v1819
        %v1833 = vpack.c.b16 %v1822, %v1821
        %v1834 = vpack.c.b16 %v1824, %v1823
        %v1835 = vpack.c.b16 %v1826, %v1825
        %v1836 = vpack.c.b16 %v1828, %v1827
        %v1861 = vunpack.c.l.b16 %v1797
        %v1862 = vunpack.c.l.b16 %v1798
        %v1863 = vunpack.c.l.b16 %v1799
        %v1864 = vunpack.c.l.b16 %v1800
        %v1865 = vunpack.c.l.b16 %v1801
        %v1866 = vunpack.c.l.b16 %v1802
        %v1867 = vunpack.c.l.b16 %v1803
        %v1868 = vunpack.c.l.b16 %v1804
        %v1869 = vunpack.c.l.b16 %v1805
        %v1870 = vunpack.c.l.b16 %v1806
        %v1871 = vunpack.c.l.b16 %v1807
        %v1872 = vunpack.c.l.b16 %v1808
        %v1873 = vunpack.c.l.b16 %v1809
        %v1874 = vunpack.c.l.b16 %v1810
        %v1875 = vunpack.c.l.b16 %v1811
        %v1876 = vunpack.c.l.b16 %v1812
        %v1877 = vpack.c.b16 %v1862, %v1861
        %v1878 = vpack.c.b16 %v1864, %v1863
        %v1879 = vpack.c.b16 %v1866, %v1865
        %v1880 = vpack.c.b16 %v1868, %v1867
        %v1881 = vpack.c.b16 %v1870, %v1869
        %v1882 = vpack.c.b16 %v1872, %v1871
        %v1883 = vpack.c.b16 %v1874, %v1873
        %v1884 = vpack.c.b16 %v1876, %v1875
        %1893 = vmatpush.bf16.msra.mxu0 %v1884
        %1894 = vmatpush.bf16.msra.mxu0 %v1883
        %1895 = vmatpush.bf16.msra.mxu0 %v1882
        %1896 = vmatpush.bf16.msra.mxu0 %v1881
        %1897 = vmatpush.bf16.msra.mxu0 %v1880
        %1898 = vmatpush.bf16.msra.mxu0 %v1879
        %1899 = vmatpush.bf16.msra.mxu0 %v1878
        %1900 = vmatpush.bf16.msra.mxu0 %v1877
        %1901 = vmatmul.bf16.gmra.mxu0 %v1829
        %v1902 = vpop.f32.mrf.mxu0
        %v1903 = vadd.f32 0.0, %v1902
        %v1904 = vpop.f32.mrf.mxu0
        %v1905 = vadd.f32 0.0, %v1904
        %1906 = vmatmul.bf16.gmra.mxu0 %v1830
        %v1907 = vpop.f32.mrf.mxu0
        %v1908 = vadd.f32 0.0, %v1907
        %v1909 = vpop.f32.mrf.mxu0
        %v1910 = vadd.f32 0.0, %v1909
        %1911 = vmatmul.bf16.gmra.mxu0 %v1831
        %v1912 = vpop.f32.mrf.mxu0
        %v1913 = vadd.f32 0.0, %v1912
        %v1914 = vpop.f32.mrf.mxu0
        %v1915 = vadd.f32 0.0, %v1914
        %1916 = vmatmul.bf16.gmra.mxu0 %v1832
        %v1917 = vpop.f32.mrf.mxu0
        %v1918 = vadd.f32 0.0, %v1917
        %v1919 = vpop.f32.mrf.mxu0
        %v1920 = vadd.f32 0.0, %v1919
        %1921 = vmatmul.bf16.gmra.mxu0 %v1833
        %v1922 = vpop.f32.mrf.mxu0
        %v1923 = vadd.f32 0.0, %v1922
        %v1924 = vpop.f32.mrf.mxu0
        %v1925 = vadd.f32 0.0, %v1924
        %1926 = vmatmul.bf16.gmra.mxu0 %v1834
        %v1927 = vpop.f32.mrf.mxu0
        %v1928 = vadd.f32 0.0, %v1927
        %v1929 = vpop.f32.mrf.mxu0
        %v1930 = vadd.f32 0.0, %v1929
        %1931 = vmatmul.bf16.gmra.mxu0 %v1835
        %v1932 = vpop.f32.mrf.mxu0
        %v1933 = vadd.f32 0.0, %v1932
        %v1934 = vpop.f32.mrf.mxu0
        %v1935 = vadd.f32 0.0, %v1934
        %1936 = vmatmul.bf16.gmra.mxu0 %v1836
        %v1937 = vpop.f32.mrf.mxu0
        %v1938 = vadd.f32 0.0, %v1937
        %v1939 = vpop.f32.mrf.mxu0
        %v1940 = vadd.f32 0.0, %v1939
        %1941 = vdwg.mxu0
        %v1942 = vadd.f32 %v1669, %v1903
        %v1943 = vadd.f32 %v1670, %v1905
        %v1944 = vadd.f32 %v1671, %v1908
        %v1945 = vadd.f32 %v1672, %v1910
        %v1946 = vadd.f32 %v1673, %v1913
        %v1947 = vadd.f32 %v1674, %v1915
        %v1948 = vadd.f32 %v1675, %v1918
        %v1949 = vadd.f32 %v1676, %v1920
        %v1950 = vadd.f32 %v1677, %v1923
        %v1951 = vadd.f32 %v1678, %v1925
        %v1952 = vadd.f32 %v1679, %v1928
        %v1953 = vadd.f32 %v1680, %v1930
        %v1954 = vadd.f32 %v1681, %v1933
        %v1955 = vadd.f32 %v1682, %v1935
        %v1956 = vadd.f32 %v1683, %v1938
        %v1957 = vadd.f32 %v1684, %v1940
        %s1958 = scalar_lea.vmem [#allocation2], 32
        %v1959 = vld [vmem:[%s1958] sm:$0xf]
        %v1960 = vld [vmem:[%s1958 + $0x4] sm:$0xf]
        %v1961 = vld [vmem:[%s1958 + $0x8] sm:$0xf]
        %v1962 = vld [vmem:[%s1958 + $0xc] sm:$0xf]
        %v1963 = vld [vmem:[%s1958 + $0x10] sm:$0xf]
        %v1964 = vld [vmem:[%s1958 + $0x14] sm:$0xf]
        %v1965 = vld [vmem:[%s1958 + $0x18] sm:$0xf]
        %v1966 = vld [vmem:[%s1958 + $0x1c] sm:$0xf]
        %v1967 = vld [vmem:[%s1958 + $0x20] sm:$0xf]
        %v1968 = vld [vmem:[%s1958 + $0x24] sm:$0xf]
        %v1969 = vld [vmem:[%s1958 + $0x28] sm:$0xf]
        %v1970 = vld [vmem:[%s1958 + $0x2c] sm:$0xf]
        %v1971 = vld [vmem:[%s1958 + $0x30] sm:$0xf]
        %v1972 = vld [vmem:[%s1958 + $0x34] sm:$0xf]
        %v1973 = vld [vmem:[%s1958 + $0x38] sm:$0xf]
        %v1974 = vld [vmem:[%s1958 + $0x3c] sm:$0xf]
        %v1975 = vld [vmem:[%s1958 + $0x40] sm:$0xf]
        %v1976 = vld [vmem:[%s1958 + $0x44] sm:$0xf]
        %v1977 = vld [vmem:[%s1958 + $0x48] sm:$0xf]
        %v1978 = vld [vmem:[%s1958 + $0x4c] sm:$0xf]
        %v1979 = vld [vmem:[%s1958 + $0x50] sm:$0xf]
        %v1980 = vld [vmem:[%s1958 + $0x54] sm:$0xf]
        %v1981 = vld [vmem:[%s1958 + $0x58] sm:$0xf]
        %v1982 = vld [vmem:[%s1958 + $0x5c] sm:$0xf]
        %v1983 = vld [vmem:[%s1958 + $0x60] sm:$0xf]
        %v1984 = vld [vmem:[%s1958 + $0x64] sm:$0xf]
        %v1985 = vld [vmem:[%s1958 + $0x68] sm:$0xf]
        %v1986 = vld [vmem:[%s1958 + $0x6c] sm:$0xf]
        %v1987 = vld [vmem:[%s1958 + $0x70] sm:$0xf]
        %v1988 = vld [vmem:[%s1958 + $0x74] sm:$0xf]
        %v1989 = vld [vmem:[%s1958 + $0x78] sm:$0xf]
        %v1990 = vld [vmem:[%s1958 + $0x7c] sm:$0xf]
        %v1992 = vshrl.u32 %v1959, 16
        %v1994 = vrot.slane %v1992, 7
        %v1995 = vrot.slane %v1994, 4
        %v1997 = vshrl.u32 %v1960, 16
        %v1999 = vrot.slane %v1997, 7
        %v2000 = vshll.u32 %v1960, 16
        %v2002 = vor.u32 %v1999, %v2000
        %v2003 = vsel %vm380, %v1995, %v2002
        %v2004 = vrot.slane %v1999, 4
        %v2006 = vshrl.u32 %v1961, 16
        %v2008 = vrot.slane %v2006, 7
        %v2009 = vshll.u32 %v1961, 16
        %v2011 = vor.u32 %v2008, %v2009
        %v2012 = vsel %vm380, %v2004, %v2011
        %v2014 = vshrl.u32 %v1963, 16
        %v2016 = vrot.slane %v2014, 7
        %v2017 = vrot.slane %v2016, 4
        %v2019 = vshrl.u32 %v1964, 16
        %v2021 = vrot.slane %v2019, 7
        %v2022 = vshll.u32 %v1964, 16
        %v2024 = vor.u32 %v2021, %v2022
        %v2025 = vsel %vm380, %v2017, %v2024
        %v2026 = vrot.slane %v2021, 4
        %v2028 = vshrl.u32 %v1965, 16
        %v2030 = vrot.slane %v2028, 7
        %v2031 = vshll.u32 %v1965, 16
        %v2033 = vor.u32 %v2030, %v2031
        %v2034 = vsel %vm380, %v2026, %v2033
        %v2036 = vshrl.u32 %v1967, 16
        %v2038 = vrot.slane %v2036, 7
        %v2039 = vrot.slane %v2038, 4
        %v2041 = vshrl.u32 %v1968, 16
        %v2043 = vrot.slane %v2041, 7
        %v2044 = vshll.u32 %v1968, 16
        %v2046 = vor.u32 %v2043, %v2044
        %v2047 = vsel %vm380, %v2039, %v2046
        %v2048 = vrot.slane %v2043, 4
        %v2050 = vshrl.u32 %v1969, 16
        %v2052 = vrot.slane %v2050, 7
        %v2053 = vshll.u32 %v1969, 16
        %v2055 = vor.u32 %v2052, %v2053
        %v2056 = vsel %vm380, %v2048, %v2055
        %v2058 = vshrl.u32 %v1971, 16
        %v2060 = vrot.slane %v2058, 7
        %v2061 = vrot.slane %v2060, 4
        %v2063 = vshrl.u32 %v1972, 16
        %v2065 = vrot.slane %v2063, 7
        %v2066 = vshll.u32 %v1972, 16
        %v2068 = vor.u32 %v2065, %v2066
        %v2069 = vsel %vm380, %v2061, %v2068
        %v2070 = vrot.slane %v2065, 4
        %v2072 = vshrl.u32 %v1973, 16
        %v2074 = vrot.slane %v2072, 7
        %v2075 = vshll.u32 %v1973, 16
        %v2077 = vor.u32 %v2074, %v2075
        %v2078 = vsel %vm380, %v2070, %v2077
        %v2080 = vshrl.u32 %v1975, 16
        %v2082 = vrot.slane %v2080, 7
        %v2083 = vrot.slane %v2082, 4
        %v2085 = vshrl.u32 %v1976, 16
        %v2087 = vrot.slane %v2085, 7
        %v2088 = vshll.u32 %v1976, 16
        %v2090 = vor.u32 %v2087, %v2088
        %v2091 = vsel %vm380, %v2083, %v2090
        %v2092 = vrot.slane %v2087, 4
        %v2094 = vshrl.u32 %v1977, 16
        %v2096 = vrot.slane %v2094, 7
        %v2097 = vshll.u32 %v1977, 16
        %v2099 = vor.u32 %v2096, %v2097
        %v2100 = vsel %vm380, %v2092, %v2099
        %v2102 = vshrl.u32 %v1979, 16
        %v2104 = vrot.slane %v2102, 7
        %v2105 = vrot.slane %v2104, 4
        %v2107 = vshrl.u32 %v1980, 16
        %v2109 = vrot.slane %v2107, 7
        %v2110 = vshll.u32 %v1980, 16
        %v2112 = vor.u32 %v2109, %v2110
        %v2113 = vsel %vm380, %v2105, %v2112
        %v2114 = vrot.slane %v2109, 4
        %v2116 = vshrl.u32 %v1981, 16
        %v2118 = vrot.slane %v2116, 7
        %v2119 = vshll.u32 %v1981, 16
        %v2121 = vor.u32 %v2118, %v2119
        %v2122 = vsel %vm380, %v2114, %v2121
        %v2124 = vshrl.u32 %v1983, 16
        %v2126 = vrot.slane %v2124, 7
        %v2127 = vrot.slane %v2126, 4
        %v2129 = vshrl.u32 %v1984, 16
        %v2131 = vrot.slane %v2129, 7
        %v2132 = vshll.u32 %v1984, 16
        %v2134 = vor.u32 %v2131, %v2132
        %v2135 = vsel %vm380, %v2127, %v2134
        %v2136 = vrot.slane %v2131, 4
        %v2138 = vshrl.u32 %v1985, 16
        %v2140 = vrot.slane %v2138, 7
        %v2141 = vshll.u32 %v1985, 16
        %v2143 = vor.u32 %v2140, %v2141
        %v2144 = vsel %vm380, %v2136, %v2143
        %v2146 = vshrl.u32 %v1987, 16
        %v2148 = vrot.slane %v2146, 7
        %v2149 = vrot.slane %v2148, 4
        %v2151 = vshrl.u32 %v1988, 16
        %v2153 = vrot.slane %v2151, 7
        %v2154 = vshll.u32 %v1988, 16
        %v2156 = vor.u32 %v2153, %v2154
        %v2157 = vsel %vm380, %v2149, %v2156
        %v2158 = vrot.slane %v2153, 4
        %v2160 = vshrl.u32 %v1989, 16
        %v2162 = vrot.slane %v2160, 7
        %v2163 = vshll.u32 %v1989, 16
        %v2165 = vor.u32 %v2162, %v2163
        %v2166 = vsel %vm380, %v2158, %v2165
        %v2167 = vld [vmem:[#allocation6 + $0x180] sm:$0xf]
        %v2168 = vld [vmem:[#allocation6 + $0x184] sm:$0xf]
        %v2169 = vld [vmem:[#allocation6 + $0x188] sm:$0xf]
        %v2170 = vld [vmem:[#allocation6 + $0x18c] sm:$0xf]
        %v2171 = vld [vmem:[#allocation6 + $0x190] sm:$0xf]
        %v2172 = vld [vmem:[#allocation6 + $0x194] sm:$0xf]
        %v2173 = vld [vmem:[#allocation6 + $0x198] sm:$0xf]
        %v2174 = vld [vmem:[#allocation6 + $0x19c] sm:$0xf]
        %v2175 = vld [vmem:[#allocation6 + $0x1a0] sm:$0xf]
        %v2176 = vld [vmem:[#allocation6 + $0x1a4] sm:$0xf]
        %v2177 = vld [vmem:[#allocation6 + $0x1a8] sm:$0xf]
        %v2178 = vld [vmem:[#allocation6 + $0x1ac] sm:$0xf]
        %v2179 = vld [vmem:[#allocation6 + $0x1b0] sm:$0xf]
        %v2180 = vld [vmem:[#allocation6 + $0x1b4] sm:$0xf]
        %v2181 = vld [vmem:[#allocation6 + $0x1b8] sm:$0xf]
        %v2182 = vld [vmem:[#allocation6 + $0x1bc] sm:$0xf]
        %v2183 = vunpack.c.l.b16 %v2003
        %v2184 = vunpack.c.l.b16 %v2012
        %v2185 = vunpack.c.l.b16 %v2025
        %v2186 = vunpack.c.l.b16 %v2034
        %v2187 = vunpack.c.l.b16 %v2047
        %v2188 = vunpack.c.l.b16 %v2056
        %v2189 = vunpack.c.l.b16 %v2069
        %v2190 = vunpack.c.l.b16 %v2078
        %v2191 = vunpack.c.l.b16 %v2091
        %v2192 = vunpack.c.l.b16 %v2100
        %v2193 = vunpack.c.l.b16 %v2113
        %v2194 = vunpack.c.l.b16 %v2122
        %v2195 = vunpack.c.l.b16 %v2135
        %v2196 = vunpack.c.l.b16 %v2144
        %v2197 = vunpack.c.l.b16 %v2157
        %v2198 = vunpack.c.l.b16 %v2166
        %v2199 = vpack.c.b16 %v2184, %v2183
        %v2200 = vpack.c.b16 %v2186, %v2185
        %v2201 = vpack.c.b16 %v2188, %v2187
        %v2202 = vpack.c.b16 %v2190, %v2189
        %v2203 = vpack.c.b16 %v2192, %v2191
        %v2204 = vpack.c.b16 %v2194, %v2193
        %v2205 = vpack.c.b16 %v2196, %v2195
        %v2206 = vpack.c.b16 %v2198, %v2197
        %v2231 = vunpack.c.l.b16 %v2167
        %v2232 = vunpack.c.l.b16 %v2168
        %v2233 = vunpack.c.l.b16 %v2169
        %v2234 = vunpack.c.l.b16 %v2170
        %v2235 = vunpack.c.l.b16 %v2171
        %v2236 = vunpack.c.l.b16 %v2172
        %v2237 = vunpack.c.l.b16 %v2173
        %v2238 = vunpack.c.l.b16 %v2174
        %v2239 = vunpack.c.l.b16 %v2175
        %v2240 = vunpack.c.l.b16 %v2176
        %v2241 = vunpack.c.l.b16 %v2177
        %v2242 = vunpack.c.l.b16 %v2178
        %v2243 = vunpack.c.l.b16 %v2179
        %v2244 = vunpack.c.l.b16 %v2180
        %v2245 = vunpack.c.l.b16 %v2181
        %v2246 = vunpack.c.l.b16 %v2182
        %v2247 = vpack.c.b16 %v2232, %v2231
        %v2248 = vpack.c.b16 %v2234, %v2233
        %v2249 = vpack.c.b16 %v2236, %v2235
        %v2250 = vpack.c.b16 %v2238, %v2237
        %v2251 = vpack.c.b16 %v2240, %v2239
        %v2252 = vpack.c.b16 %v2242, %v2241
        %v2253 = vpack.c.b16 %v2244, %v2243
        %v2254 = vpack.c.b16 %v2246, %v2245
        %2263 = vmatpush.bf16.msra.mxu0 %v2254
        %2264 = vmatpush.bf16.msra.mxu0 %v2253
        %2265 = vmatpush.bf16.msra.mxu0 %v2252
        %2266 = vmatpush.bf16.msra.mxu0 %v2251
        %2267 = vmatpush.bf16.msra.mxu0 %v2250
        %2268 = vmatpush.bf16.msra.mxu0 %v2249
        %2269 = vmatpush.bf16.msra.mxu0 %v2248
        %2270 = vmatpush.bf16.msra.mxu0 %v2247
        %2271 = vmatmul.bf16.gmra.mxu0 %v2199
        %v2272 = vpop.f32.mrf.mxu0
        %v2273 = vadd.f32 0.0, %v2272
        %v2274 = vpop.f32.mrf.mxu0
        %v2275 = vadd.f32 0.0, %v2274
        %2276 = vmatmul.bf16.gmra.mxu0 %v2200
        %v2277 = vpop.f32.mrf.mxu0
        %v2278 = vadd.f32 0.0, %v2277
        %v2279 = vpop.f32.mrf.mxu0
        %v2280 = vadd.f32 0.0, %v2279
        %2281 = vmatmul.bf16.gmra.mxu0 %v2201
        %v2282 = vpop.f32.mrf.mxu0
        %v2283 = vadd.f32 0.0, %v2282
        %v2284 = vpop.f32.mrf.mxu0
        %v2285 = vadd.f32 0.0, %v2284
        %2286 = vmatmul.bf16.gmra.mxu0 %v2202
        %v2287 = vpop.f32.mrf.mxu0
        %v2288 = vadd.f32 0.0, %v2287
        %v2289 = vpop.f32.mrf.mxu0
        %v2290 = vadd.f32 0.0, %v2289
        %2291 = vmatmul.bf16.gmra.mxu0 %v2203
        %v2292 = vpop.f32.mrf.mxu0
        %v2293 = vadd.f32 0.0, %v2292
        %v2294 = vpop.f32.mrf.mxu0
        %v2295 = vadd.f32 0.0, %v2294
        %2296 = vmatmul.bf16.gmra.mxu0 %v2204
        %v2297 = vpop.f32.mrf.mxu0
        %v2298 = vadd.f32 0.0, %v2297
        %v2299 = vpop.f32.mrf.mxu0
        %v2300 = vadd.f32 0.0, %v2299
        %2301 = vmatmul.bf16.gmra.mxu0 %v2205
        %v2302 = vpop.f32.mrf.mxu0
        %v2303 = vadd.f32 0.0, %v2302
        %v2304 = vpop.f32.mrf.mxu0
        %v2305 = vadd.f32 0.0, %v2304
        %2306 = vmatmul.bf16.gmra.mxu0 %v2206
        %v2307 = vpop.f32.mrf.mxu0
        %v2308 = vadd.f32 0.0, %v2307
        %v2309 = vpop.f32.mrf.mxu0
        %v2310 = vadd.f32 0.0, %v2309
        %2311 = vdwg.mxu0
        %v2312 = vadd.f32 %v1942, %v2273
        %v2313 = vadd.f32 %v1943, %v2275
        %v2314 = vadd.f32 %v1944, %v2278
        %v2315 = vadd.f32 %v1945, %v2280
        %v2316 = vadd.f32 %v1946, %v2283
        %v2317 = vadd.f32 %v1947, %v2285
        %v2318 = vadd.f32 %v1948, %v2288
        %v2319 = vadd.f32 %v1949, %v2290
        %v2320 = vadd.f32 %v1950, %v2293
        %v2321 = vadd.f32 %v1951, %v2295
        %v2322 = vadd.f32 %v1952, %v2298
        %v2323 = vadd.f32 %v1953, %v2300
        %v2324 = vadd.f32 %v1954, %v2303
        %v2325 = vadd.f32 %v1955, %v2305
        %v2326 = vadd.f32 %v1956, %v2308
        %v2327 = vadd.f32 %v1957, %v2310
        %v2328 = vld [vmem:[#allocation6 + $0x1c0] sm:$0xf]
        %v2329 = vld [vmem:[#allocation6 + $0x1c4] sm:$0xf]
        %v2330 = vld [vmem:[#allocation6 + $0x1c8] sm:$0xf]
        %v2331 = vld [vmem:[#allocation6 + $0x1cc] sm:$0xf]
        %v2332 = vld [vmem:[#allocation6 + $0x1d0] sm:$0xf]
        %v2333 = vld [vmem:[#allocation6 + $0x1d4] sm:$0xf]
        %v2334 = vld [vmem:[#allocation6 + $0x1d8] sm:$0xf]
        %v2335 = vld [vmem:[#allocation6 + $0x1dc] sm:$0xf]
        %v2336 = vld [vmem:[#allocation6 + $0x1e0] sm:$0xf]
        %v2337 = vld [vmem:[#allocation6 + $0x1e4] sm:$0xf]
        %v2338 = vld [vmem:[#allocation6 + $0x1e8] sm:$0xf]
        %v2339 = vld [vmem:[#allocation6 + $0x1ec] sm:$0xf]
        %v2340 = vld [vmem:[#allocation6 + $0x1f0] sm:$0xf]
        %v2341 = vld [vmem:[#allocation6 + $0x1f4] sm:$0xf]
        %v2342 = vld [vmem:[#allocation6 + $0x1f8] sm:$0xf]
        %v2343 = vld [vmem:[#allocation6 + $0x1fc] sm:$0xf]
        %v2360 = vunpack.c.l.b16 %v1960
        %v2361 = vunpack.c.l.b16 %v1961
        %v2362 = vunpack.c.l.b16 %v1964
        %v2363 = vunpack.c.l.b16 %v1965
        %v2364 = vunpack.c.l.b16 %v1968
        %v2365 = vunpack.c.l.b16 %v1969
        %v2366 = vunpack.c.l.b16 %v1972
        %v2367 = vunpack.c.l.b16 %v1973
        %v2368 = vunpack.c.l.b16 %v1976
        %v2369 = vunpack.c.l.b16 %v1977
        %v2370 = vunpack.c.l.b16 %v1980
        %v2371 = vunpack.c.l.b16 %v1981
        %v2372 = vunpack.c.l.b16 %v1984
        %v2373 = vunpack.c.l.b16 %v1985
        %v2374 = vunpack.c.l.b16 %v1988
        %v2375 = vunpack.c.l.b16 %v1989
        %v2376 = vpack.c.b16 %v2361, %v2360
        %v2377 = vpack.c.b16 %v2363, %v2362
        %v2378 = vpack.c.b16 %v2365, %v2364
        %v2379 = vpack.c.b16 %v2367, %v2366
        %v2380 = vpack.c.b16 %v2369, %v2368
        %v2381 = vpack.c.b16 %v2371, %v2370
        %v2382 = vpack.c.b16 %v2373, %v2372
        %v2383 = vpack.c.b16 %v2375, %v2374
        %v2408 = vunpack.c.l.b16 %v2328
        %v2409 = vunpack.c.l.b16 %v2329
        %v2410 = vunpack.c.l.b16 %v2330
        %v2411 = vunpack.c.l.b16 %v2331
        %v2412 = vunpack.c.l.b16 %v2332
        %v2413 = vunpack.c.l.b16 %v2333
        %v2414 = vunpack.c.l.b16 %v2334
        %v2415 = vunpack.c.l.b16 %v2335
        %v2416 = vunpack.c.l.b16 %v2336
        %v2417 = vunpack.c.l.b16 %v2337
        %v2418 = vunpack.c.l.b16 %v2338
        %v2419 = vunpack.c.l.b16 %v2339
        %v2420 = vunpack.c.l.b16 %v2340
        %v2421 = vunpack.c.l.b16 %v2341
        %v2422 = vunpack.c.l.b16 %v2342
        %v2423 = vunpack.c.l.b16 %v2343
        %v2424 = vpack.c.b16 %v2409, %v2408
        %v2425 = vpack.c.b16 %v2411, %v2410
        %v2426 = vpack.c.b16 %v2413, %v2412
        %v2427 = vpack.c.b16 %v2415, %v2414
        %v2428 = vpack.c.b16 %v2417, %v2416
        %v2429 = vpack.c.b16 %v2419, %v2418
        %v2430 = vpack.c.b16 %v2421, %v2420
        %v2431 = vpack.c.b16 %v2423, %v2422
        %2440 = vmatpush.bf16.msra.mxu0 %v2431
        %2441 = vmatpush.bf16.msra.mxu0 %v2430
        %2442 = vmatpush.bf16.msra.mxu0 %v2429
        %2443 = vmatpush.bf16.msra.mxu0 %v2428
        %2444 = vmatpush.bf16.msra.mxu0 %v2427
        %2445 = vmatpush.bf16.msra.mxu0 %v2426
        %2446 = vmatpush.bf16.msra.mxu0 %v2425
        %2447 = vmatpush.bf16.msra.mxu0 %v2424
        %2448 = vmatmul.bf16.gmra.mxu0 %v2376
        %v2449 = vpop.f32.mrf.mxu0
        %v2450 = vadd.f32 0.0, %v2449
        %v2451 = vpop.f32.mrf.mxu0
        %v2452 = vadd.f32 0.0, %v2451
        %2453 = vmatmul.bf16.gmra.mxu0 %v2377
        %v2454 = vpop.f32.mrf.mxu0
        %v2455 = vadd.f32 0.0, %v2454
        %v2456 = vpop.f32.mrf.mxu0
        %v2457 = vadd.f32 0.0, %v2456
        %2458 = vmatmul.bf16.gmra.mxu0 %v2378
        %v2459 = vpop.f32.mrf.mxu0
        %v2460 = vadd.f32 0.0, %v2459
        %v2461 = vpop.f32.mrf.mxu0
        %v2462 = vadd.f32 0.0, %v2461
        %2463 = vmatmul.bf16.gmra.mxu0 %v2379
        %v2464 = vpop.f32.mrf.mxu0
        %v2465 = vadd.f32 0.0, %v2464
        %v2466 = vpop.f32.mrf.mxu0
        %v2467 = vadd.f32 0.0, %v2466
        %2468 = vmatmul.bf16.gmra.mxu0 %v2380
        %v2469 = vpop.f32.mrf.mxu0
        %v2470 = vadd.f32 0.0, %v2469
        %v2471 = vpop.f32.mrf.mxu0
        %v2472 = vadd.f32 0.0, %v2471
        %2473 = vmatmul.bf16.gmra.mxu0 %v2381
        %v2474 = vpop.f32.mrf.mxu0
        %v2475 = vadd.f32 0.0, %v2474
        %v2476 = vpop.f32.mrf.mxu0
        %v2477 = vadd.f32 0.0, %v2476
        %2478 = vmatmul.bf16.gmra.mxu0 %v2382
        %v2479 = vpop.f32.mrf.mxu0
        %v2480 = vadd.f32 0.0, %v2479
        %v2481 = vpop.f32.mrf.mxu0
        %v2482 = vadd.f32 0.0, %v2481
        %2483 = vmatmul.bf16.gmra.mxu0 %v2383
        %v2484 = vpop.f32.mrf.mxu0
        %v2485 = vadd.f32 0.0, %v2484
        %v2486 = vpop.f32.mrf.mxu0
        %v2487 = vadd.f32 0.0, %v2486
        %2488 = vdwg.mxu0
        %v2489 = vadd.f32 %v2312, %v2450
        %v2490 = vadd.f32 %v2313, %v2452
        %v2491 = vadd.f32 %v2314, %v2455
        %v2492 = vadd.f32 %v2315, %v2457
        %v2493 = vadd.f32 %v2316, %v2460
        %v2494 = vadd.f32 %v2317, %v2462
        %v2495 = vadd.f32 %v2318, %v2465
        %v2496 = vadd.f32 %v2319, %v2467
        %v2497 = vadd.f32 %v2320, %v2470
        %v2498 = vadd.f32 %v2321, %v2472
        %v2499 = vadd.f32 %v2322, %v2475
        %v2500 = vadd.f32 %v2323, %v2477
        %v2501 = vadd.f32 %v2324, %v2480
        %v2502 = vadd.f32 %v2325, %v2482
        %v2503 = vadd.f32 %v2326, %v2485
        %v2504 = vadd.f32 %v2327, %v2487
        %v2505 = vrot.slane %v1997, 4
        %v2506 = vrot.slane %v2000, 5
        %v2507 = vor.u32 %v2505, %v2506
        %v2508 = vrot.slane %v2507, 4
        %v2509 = vrot.slane %v2009, 5
        %v2510 = vsel %vm865, %v2508, %v2509
        %v2511 = vrot.slane %v2006, 4
        %v2512 = vor.u32 %v2511, %v2509
        %v2513 = vrot.slane %v2512, 4
        %v2515 = vshll.u32 %v1962, 16
        %v2517 = vrot.slane %v2515, 5
        %v2518 = vsel %vm865, %v2513, %v2517
        %v2519 = vrot.slane %v2019, 4
        %v2520 = vrot.slane %v2022, 5
        %v2521 = vor.u32 %v2519, %v2520
        %v2522 = vrot.slane %v2521, 4
        %v2523 = vrot.slane %v2031, 5
        %v2524 = vsel %vm865, %v2522, %v2523
        %v2525 = vrot.slane %v2028, 4
        %v2526 = vor.u32 %v2525, %v2523
        %v2527 = vrot.slane %v2526, 4
        %v2529 = vshll.u32 %v1966, 16
        %v2531 = vrot.slane %v2529, 5
        %v2532 = vsel %vm865, %v2527, %v2531
        %v2533 = vrot.slane %v2041, 4
        %v2534 = vrot.slane %v2044, 5
        %v2535 = vor.u32 %v2533, %v2534
        %v2536 = vrot.slane %v2535, 4
        %v2537 = vrot.slane %v2053, 5
        %v2538 = vsel %vm865, %v2536, %v2537
        %v2539 = vrot.slane %v2050, 4
        %v2540 = vor.u32 %v2539, %v2537
        %v2541 = vrot.slane %v2540, 4
        %v2543 = vshll.u32 %v1970, 16
        %v2545 = vrot.slane %v2543, 5
        %v2546 = vsel %vm865, %v2541, %v2545
        %v2547 = vrot.slane %v2063, 4
        %v2548 = vrot.slane %v2066, 5
        %v2549 = vor.u32 %v2547, %v2548
        %v2550 = vrot.slane %v2549, 4
        %v2551 = vrot.slane %v2075, 5
        %v2552 = vsel %vm865, %v2550, %v2551
        %v2553 = vrot.slane %v2072, 4
        %v2554 = vor.u32 %v2553, %v2551
        %v2555 = vrot.slane %v2554, 4
        %v2557 = vshll.u32 %v1974, 16
        %v2559 = vrot.slane %v2557, 5
        %v2560 = vsel %vm865, %v2555, %v2559
        %v2561 = vrot.slane %v2085, 4
        %v2562 = vrot.slane %v2088, 5
        %v2563 = vor.u32 %v2561, %v2562
        %v2564 = vrot.slane %v2563, 4
        %v2565 = vrot.slane %v2097, 5
        %v2566 = vsel %vm865, %v2564, %v2565
        %v2567 = vrot.slane %v2094, 4
        %v2568 = vor.u32 %v2567, %v2565
        %v2569 = vrot.slane %v2568, 4
        %v2571 = vshll.u32 %v1978, 16
        %v2573 = vrot.slane %v2571, 5
        %v2574 = vsel %vm865, %v2569, %v2573
        %v2575 = vrot.slane %v2107, 4
        %v2576 = vrot.slane %v2110, 5
        %v2577 = vor.u32 %v2575, %v2576
        %v2578 = vrot.slane %v2577, 4
        %v2579 = vrot.slane %v2119, 5
        %v2580 = vsel %vm865, %v2578, %v2579
        %v2581 = vrot.slane %v2116, 4
        %v2582 = vor.u32 %v2581, %v2579
        %v2583 = vrot.slane %v2582, 4
        %v2585 = vshll.u32 %v1982, 16
        %v2587 = vrot.slane %v2585, 5
        %v2588 = vsel %vm865, %v2583, %v2587
        %v2589 = vrot.slane %v2129, 4
        %v2590 = vrot.slane %v2132, 5
        %v2591 = vor.u32 %v2589, %v2590
        %v2592 = vrot.slane %v2591, 4
        %v2593 = vrot.slane %v2141, 5
        %v2594 = vsel %vm865, %v2592, %v2593
        %v2595 = vrot.slane %v2138, 4
        %v2596 = vor.u32 %v2595, %v2593
        %v2597 = vrot.slane %v2596, 4
        %v2599 = vshll.u32 %v1986, 16
        %v2601 = vrot.slane %v2599, 5
        %v2602 = vsel %vm865, %v2597, %v2601
        %v2603 = vrot.slane %v2151, 4
        %v2604 = vrot.slane %v2154, 5
        %v2605 = vor.u32 %v2603, %v2604
        %v2606 = vrot.slane %v2605, 4
        %v2607 = vrot.slane %v2163, 5
        %v2608 = vsel %vm865, %v2606, %v2607
        %v2609 = vrot.slane %v2160, 4
        %v2610 = vor.u32 %v2609, %v2607
        %v2611 = vrot.slane %v2610, 4
        %v2613 = vshll.u32 %v1990, 16
        %v2615 = vrot.slane %v2613, 5
        %v2616 = vsel %vm865, %v2611, %v2615
        %v2617 = vld [vmem:[#allocation6 + $0x200] sm:$0xf]
        %v2618 = vld [vmem:[#allocation6 + $0x204] sm:$0xf]
        %v2619 = vld [vmem:[#allocation6 + $0x208] sm:$0xf]
        %v2620 = vld [vmem:[#allocation6 + $0x20c] sm:$0xf]
        %v2621 = vld [vmem:[#allocation6 + $0x210] sm:$0xf]
        %v2622 = vld [vmem:[#allocation6 + $0x214] sm:$0xf]
        %v2623 = vld [vmem:[#allocation6 + $0x218] sm:$0xf]
        %v2624 = vld [vmem:[#allocation6 + $0x21c] sm:$0xf]
        %v2625 = vld [vmem:[#allocation6 + $0x220] sm:$0xf]
        %v2626 = vld [vmem:[#allocation6 + $0x224] sm:$0xf]
        %v2627 = vld [vmem:[#allocation6 + $0x228] sm:$0xf]
        %v2628 = vld [vmem:[#allocation6 + $0x22c] sm:$0xf]
        %v2629 = vld [vmem:[#allocation6 + $0x230] sm:$0xf]
        %v2630 = vld [vmem:[#allocation6 + $0x234] sm:$0xf]
        %v2631 = vld [vmem:[#allocation6 + $0x238] sm:$0xf]
        %v2632 = vld [vmem:[#allocation6 + $0x23c] sm:$0xf]
        %v2633 = vunpack.c.l.b16 %v2510
        %v2634 = vunpack.c.l.b16 %v2518
        %v2635 = vunpack.c.l.b16 %v2524
        %v2636 = vunpack.c.l.b16 %v2532
        %v2637 = vunpack.c.l.b16 %v2538
        %v2638 = vunpack.c.l.b16 %v2546
        %v2639 = vunpack.c.l.b16 %v2552
        %v2640 = vunpack.c.l.b16 %v2560
        %v2641 = vunpack.c.l.b16 %v2566
        %v2642 = vunpack.c.l.b16 %v2574
        %v2643 = vunpack.c.l.b16 %v2580
        %v2644 = vunpack.c.l.b16 %v2588
        %v2645 = vunpack.c.l.b16 %v2594
        %v2646 = vunpack.c.l.b16 %v2602
        %v2647 = vunpack.c.l.b16 %v2608
        %v2648 = vunpack.c.l.b16 %v2616
        %v2649 = vpack.c.b16 %v2634, %v2633
        %v2650 = vpack.c.b16 %v2636, %v2635
        %v2651 = vpack.c.b16 %v2638, %v2637
        %v2652 = vpack.c.b16 %v2640, %v2639
        %v2653 = vpack.c.b16 %v2642, %v2641
        %v2654 = vpack.c.b16 %v2644, %v2643
        %v2655 = vpack.c.b16 %v2646, %v2645
        %v2656 = vpack.c.b16 %v2648, %v2647
        %v2681 = vunpack.c.l.b16 %v2617
        %v2682 = vunpack.c.l.b16 %v2618
        %v2683 = vunpack.c.l.b16 %v2619
        %v2684 = vunpack.c.l.b16 %v2620
        %v2685 = vunpack.c.l.b16 %v2621
        %v2686 = vunpack.c.l.b16 %v2622
        %v2687 = vunpack.c.l.b16 %v2623
        %v2688 = vunpack.c.l.b16 %v2624
        %v2689 = vunpack.c.l.b16 %v2625
        %v2690 = vunpack.c.l.b16 %v2626
        %v2691 = vunpack.c.l.b16 %v2627
        %v2692 = vunpack.c.l.b16 %v2628
        %v2693 = vunpack.c.l.b16 %v2629
        %v2694 = vunpack.c.l.b16 %v2630
        %v2695 = vunpack.c.l.b16 %v2631
        %v2696 = vunpack.c.l.b16 %v2632
        %v2697 = vpack.c.b16 %v2682, %v2681
        %v2698 = vpack.c.b16 %v2684, %v2683
        %v2699 = vpack.c.b16 %v2686, %v2685
        %v2700 = vpack.c.b16 %v2688, %v2687
        %v2701 = vpack.c.b16 %v2690, %v2689
        %v2702 = vpack.c.b16 %v2692, %v2691
        %v2703 = vpack.c.b16 %v2694, %v2693
        %v2704 = vpack.c.b16 %v2696, %v2695
        %2713 = vmatpush.bf16.msra.mxu0 %v2704
        %2714 = vmatpush.bf16.msra.mxu0 %v2703
        %2715 = vmatpush.bf16.msra.mxu0 %v2702
        %2716 = vmatpush.bf16.msra.mxu0 %v2701
        %2717 = vmatpush.bf16.msra.mxu0 %v2700
        %2718 = vmatpush.bf16.msra.mxu0 %v2699
        %2719 = vmatpush.bf16.msra.mxu0 %v2698
        %2720 = vmatpush.bf16.msra.mxu0 %v2697
        %2721 = vmatmul.bf16.gmra.mxu0 %v2649
        %v2722 = vpop.f32.mrf.mxu0
        %v2723 = vadd.f32 0.0, %v2722
        %v2724 = vpop.f32.mrf.mxu0
        %v2725 = vadd.f32 0.0, %v2724
        %2726 = vmatmul.bf16.gmra.mxu0 %v2650
        %v2727 = vpop.f32.mrf.mxu0
        %v2728 = vadd.f32 0.0, %v2727
        %v2729 = vpop.f32.mrf.mxu0
        %v2730 = vadd.f32 0.0, %v2729
        %2731 = vmatmul.bf16.gmra.mxu0 %v2651
        %v2732 = vpop.f32.mrf.mxu0
        %v2733 = vadd.f32 0.0, %v2732
        %v2734 = vpop.f32.mrf.mxu0
        %v2735 = vadd.f32 0.0, %v2734
        %2736 = vmatmul.bf16.gmra.mxu0 %v2652
        %v2737 = vpop.f32.mrf.mxu0
        %v2738 = vadd.f32 0.0, %v2737
        %v2739 = vpop.f32.mrf.mxu0
        %v2740 = vadd.f32 0.0, %v2739
        %2741 = vmatmul.bf16.gmra.mxu0 %v2653
        %v2742 = vpop.f32.mrf.mxu0
        %v2743 = vadd.f32 0.0, %v2742
        %v2744 = vpop.f32.mrf.mxu0
        %v2745 = vadd.f32 0.0, %v2744
        %2746 = vmatmul.bf16.gmra.mxu0 %v2654
        %v2747 = vpop.f32.mrf.mxu0
        %v2748 = vadd.f32 0.0, %v2747
        %v2749 = vpop.f32.mrf.mxu0
        %v2750 = vadd.f32 0.0, %v2749
        %2751 = vmatmul.bf16.gmra.mxu0 %v2655
        %v2752 = vpop.f32.mrf.mxu0
        %v2753 = vadd.f32 0.0, %v2752
        %v2754 = vpop.f32.mrf.mxu0
        %v2755 = vadd.f32 0.0, %v2754
        %2756 = vmatmul.bf16.gmra.mxu0 %v2656
        %v2757 = vpop.f32.mrf.mxu0
        %v2758 = vadd.f32 0.0, %v2757
        %v2759 = vpop.f32.mrf.mxu0
        %v2760 = vadd.f32 0.0, %v2759
        %2761 = vdwg.mxu0
        %v2762 = vadd.f32 %v2489, %v2723
        %v2763 = vadd.f32 %v2490, %v2725
        %v2764 = vadd.f32 %v2491, %v2728
        %v2765 = vadd.f32 %v2492, %v2730
        %v2766 = vadd.f32 %v2493, %v2733
        %v2767 = vadd.f32 %v2494, %v2735
        %v2768 = vadd.f32 %v2495, %v2738
        %v2769 = vadd.f32 %v2496, %v2740
        %v2770 = vadd.f32 %v2497, %v2743
        %v2771 = vadd.f32 %v2498, %v2745
        %v2772 = vadd.f32 %v2499, %v2748
        %v2773 = vadd.f32 %v2500, %v2750
        %v2774 = vadd.f32 %v2501, %v2753
        %v2775 = vadd.f32 %v2502, %v2755
        %v2776 = vadd.f32 %v2503, %v2758
        %v2777 = vadd.f32 %v2504, %v2760
        %v2778 = vld [vmem:[%s2] sm:$0x1]
        %v2780 = vperm.slane %v2778, 0
        %v2782 = vmul.f32 %v2762, %v2780
        %v2783 = vmul.f32 %v2763, %v2780
        %v2784 = vmul.f32 %v2764, %v2780
        %v2785 = vmul.f32 %v2765, %v2780
        %v2786 = vmul.f32 %v2766, %v2780
        %v2787 = vmul.f32 %v2767, %v2780
        %v2788 = vmul.f32 %v2768, %v2780
        %v2789 = vmul.f32 %v2769, %v2780
        %v2790 = vmul.f32 %v2770, %v2780
        %v2791 = vmul.f32 %v2771, %v2780
        %v2792 = vmul.f32 %v2772, %v2780
        %v2793 = vmul.f32 %v2773, %v2780
        %v2794 = vmul.f32 %v2774, %v2780
        %v2795 = vmul.f32 %v2775, %v2780
        %v2796 = vmul.f32 %v2776, %v2780
        %v2797 = vmul.f32 %v2777, %v2780
        %v2798 = vld [vmem:[%s3] sm:$0x1]
        %v2800 = vperm.slane %v2798, 0
        %v2802 = vadd.f32 %v2782, %v2800
        %v2803 = vadd.f32 %v2783, %v2800
        %v2804 = vadd.f32 %v2784, %v2800
        %v2805 = vadd.f32 %v2785, %v2800
        %v2806 = vadd.f32 %v2786, %v2800
        %v2807 = vadd.f32 %v2787, %v2800
        %v2808 = vadd.f32 %v2788, %v2800
        %v2809 = vadd.f32 %v2789, %v2800
        %v2810 = vadd.f32 %v2790, %v2800
        %v2811 = vadd.f32 %v2791, %v2800
        %v2812 = vadd.f32 %v2792, %v2800
        %v2813 = vadd.f32 %v2793, %v2800
        %v2814 = vadd.f32 %v2794, %v2800
        %v2815 = vadd.f32 %v2795, %v2800
        %v2816 = vadd.f32 %v2796, %v2800
        %v2817 = vadd.f32 %v2797, %v2800
        %v2818 = vmax.f32 %v2802, 0.0
        %v2819 = vmax.f32 %v2803, 0.0
        %v2820 = vmax.f32 %v2804, 0.0
        %v2821 = vmax.f32 %v2805, 0.0
        %v2822 = vmax.f32 %v2806, 0.0
        %v2823 = vmax.f32 %v2807, 0.0
        %v2824 = vmax.f32 %v2808, 0.0
        %v2825 = vmax.f32 %v2809, 0.0
        %v2826 = vmax.f32 %v2810, 0.0
        %v2827 = vmax.f32 %v2811, 0.0
        %v2828 = vmax.f32 %v2812, 0.0
        %v2829 = vmax.f32 %v2813, 0.0
        %v2830 = vmax.f32 %v2814, 0.0
        %v2831 = vmax.f32 %v2815, 0.0
        %v2832 = vmax.f32 %v2816, 0.0
        %v2833 = vmax.f32 %v2817, 0.0
        %v2834 = vmin.f32 %v2818, 6.0
        %v2835 = vmin.f32 %v2819, 6.0
        %v2836 = vmin.f32 %v2820, 6.0
        %v2837 = vmin.f32 %v2821, 6.0
        %v2838 = vmin.f32 %v2822, 6.0
        %v2839 = vmin.f32 %v2823, 6.0
        %v2840 = vmin.f32 %v2824, 6.0
        %v2841 = vmin.f32 %v2825, 6.0
        %v2842 = vmin.f32 %v2826, 6.0
        %v2843 = vmin.f32 %v2827, 6.0
        %v2844 = vmin.f32 %v2828, 6.0
        %v2845 = vmin.f32 %v2829, 6.0
        %v2846 = vmin.f32 %v2830, 6.0
        %v2847 = vmin.f32 %v2831, 6.0
        %v2848 = vmin.f32 %v2832, 6.0
        %v2849 = vmin.f32 %v2833, 6.0
        %v2850 = vpack.c.bf16 %v2834, %v2834
        %v2851 = vpack.c.bf16 %v2835, %v2835
        %v2852 = vpack.c.bf16 %v2836, %v2836
        %v2853 = vpack.c.bf16 %v2837, %v2837
        %v2854 = vpack.c.bf16 %v2838, %v2838
        %v2855 = vpack.c.bf16 %v2839, %v2839
        %v2856 = vpack.c.bf16 %v2840, %v2840
        %v2857 = vpack.c.bf16 %v2841, %v2841
        %v2858 = vpack.c.bf16 %v2842, %v2842
        %v2859 = vpack.c.bf16 %v2843, %v2843
        %v2860 = vpack.c.bf16 %v2844, %v2844
        %v2861 = vpack.c.bf16 %v2845, %v2845
        %v2862 = vpack.c.bf16 %v2846, %v2846
        %v2863 = vpack.c.bf16 %v2847, %v2847
        %v2864 = vpack.c.bf16 %v2848, %v2848
        %v2865 = vpack.c.bf16 %v2849, %v2849
        %2866 = vst [vmem:[%s248] sm:$0xf] %v2850
        %2867 = vst [vmem:[%s248 + $0x4] sm:$0xf] %v2851
        %2868 = vst [vmem:[%s248 + $0x8] sm:$0xf] %v2852
        %2869 = vst [vmem:[%s248 + $0xc] sm:$0xf] %v2853
        %2870 = vst [vmem:[%s248 + $0x10] sm:$0xf] %v2854
        %2871 = vst [vmem:[%s248 + $0x14] sm:$0xf] %v2855
        %2872 = vst [vmem:[%s248 + $0x18] sm:$0xf] %v2856
        %2873 = vst [vmem:[%s248 + $0x1c] sm:$0xf] %v2857
        %2874 = vst [vmem:[%s248 + $0x20] sm:$0xf] %v2858
        %2875 = vst [vmem:[%s248 + $0x24] sm:$0xf] %v2859
        %2876 = vst [vmem:[%s248 + $0x28] sm:$0xf] %v2860
        %2877 = vst [vmem:[%s248 + $0x2c] sm:$0xf] %v2861
        %2878 = vst [vmem:[%s248 + $0x30] sm:$0xf] %v2862
        %2879 = vst [vmem:[%s248 + $0x34] sm:$0xf] %v2863
        %2880 = vst [vmem:[%s248 + $0x38] sm:$0xf] %v2864
        %2881 = vst [vmem:[%s248 + $0x3c] sm:$0xf] %v2865
        %s2882 = sand.u32 %s133, 1
        %s2883 = scalar_lea.sflag [#allocation5], %s2882
        %s2884 = sand.u32 %s133, 1
        %s2885 = smul.addr %s2884, 64
        %s2886 = scalar_lea.vmem [#allocation8], %s2885
        // Predicated region
        $region61: #{tpu_custom_call.1} parent=35 // pred_check
          %p2887 = pneg %p143
        $region62: #{tpu_custom_call.1} parent=35 // pred_check_branch
          %2889 = sbr.rel (%p2887) target = $region64
        $region63: #{tpu_custom_call.1} parent=35 // pred_region
          %s2890 = smul.u32 8, %s27
          %2892 = vsyncadd %s2883, 0
          %s2893 = smul.addr %s2890, 2
          %s2894 = smul.addr %s26, 32
          %s2895 = sadd.s32 %s2893, %s2894
          %s2896 = smul.addr %s2895, 4
          %s2897 = scalar_lea.hbm %s4, %s2896
          %s2898 = sshll.u32 %s2886, 4
          %s2899 = int_to_ptr.vmem [resolvable:$true] %s2898
          %s2900 = sshll.u32 %s2897, 4
          %s2901 = int_to_ptr.hbm [resolvable:$true] %s2900
          %2906 = dma.vmem_to_hbm [thread:$0]  %s2899, 1024, %s2901, %s2883, 64, 64, 4
        $region64: #{tpu_custom_call.1} parent=35 // pred_fallthru
          _
      $region36: #{tpu_custom_call.1} parent=5 // pred_fallthru
        _
      %p2907 = scmp.le.s32.totalorder 2, %s17
      // Predicated region
      $region65: #{tpu_custom_call.1} parent=5 // pred_check
        %p2908 = pneg %p2907
      $region66: #{tpu_custom_call.1} parent=5 // pred_check_branch
        %2910 = sbr.rel (%p2908) target = $region68
      $region67: #{tpu_custom_call.1} parent=5 // pred_region
        %s2911 = ssub.s32 %s17, 2
        // Predicated region
        $region69: #{tpu_custom_call.1} parent=67 // pred_check
          %p2912 = pneg %p149
        $region70: #{tpu_custom_call.1} parent=67 // pred_check_branch
          %2914 = sbr.rel (%p2912) target = $region72
        $region71: #{tpu_custom_call.1} parent=67 // pred_region
          %s2915 = sand.u32 %s134, 1
          %s2916 = scalar_lea.sflag [#allocation5], %s2915
          %s2917 = sand.u32 %s134, 1
          %s2918 = smul.addr %s2917, 64
          %s2919 = scalar_lea.vmem [#allocation8], %s2918
          %2921 = dma.done %s2916, 1024
        $region72: #{tpu_custom_call.1} parent=67 // pred_fallthru
          _
      $region68: #{tpu_custom_call.1} parent=5 // pred_fallthru
        _
    $region6: #{tpu_custom_call.1} parent=1 // loop_footer
      %s21 = sadd.s32 1, %s17
    $region7: #{tpu_custom_call.1} parent=1 // loop_footer_branch
      %16 = sbr.rel target = $region3
    $region8: #{tpu_custom_call.1} parent=1 // loop_exit
      _
    %2922 = vsyncpa [#allocation4], 1
    %s2923 = scalar_lea.sflag [#allocation4], 1
    %2924 = vsyncpa %s2923, 1
    %2925 = vsyncpa [#allocation7], 1
    %2926 = vsyncpa [#allocation5], 1
    %s2927 = scalar_lea.sflag [#allocation5], 1
    %2928 = vsyncpa %s2927, 1

</llo_original>
